<compile_context>
chip_gen: v5e
topology: v5e:2x2
jax: 0.10.0
libtpu: 0.0.40
codegen_flags: <defaults>
</compile_context>

<pallas_src>
import functools

import jax
import jax.numpy as jnp
from jax.experimental import pallas as pl
from jax.experimental.pallas import tpu as pltpu

_BN_PAD = 128  # bottleneck dims zero-padded to one aligned MXU pass


def _round_up(x, m):
    return (x + m - 1) // m * m


def _fused_daft_kernel(xa_ref, pool_ref, w0_ref, w1_ref, out_ref, *,
                       stage_meta, D, activation):
    """All 5 DAFT stages on one batch tile, FiLM deferred to a single pass.

    xa_ref   : (Bt, T, D)      f32  EHR sequence tile
    pool_ref : (Bt, 1, Cp)     f32  pooled CXR features, all stages concatenated
    w0_ref   : (R0, 128)       bf16 packed aux_base weights ([img ; ehr] per stage)
    w1_ref   : (5*128, 2D)     bf16 packed aux_out weights
    out_ref  : (Bt, T, D)
    stage_meta[s] = (c_pad, pool_off, w0_row_off)   -- static Python ints
    """
    xa = xa_ref[...]                                         # (Bt, T, D)
    pool = pool_ref[...][:, 0, :].astype(jnp.float32)        # (Bt, Cp)
    ehr_avg0 = jnp.mean(xa.astype(jnp.float32), axis=1)      # torch.mean(x_aux, 1)

    # x_aux_s = scale_acc * x_aux_0 + shift_acc   (per-channel affine carry)
    scale_acc = jnp.ones_like(ehr_avg0)
    shift_acc = jnp.zeros_like(ehr_avg0)

    for s, (c_pad, p_off, r_off) in enumerate(stage_meta):
        w0a = w0_ref[pl.ds(r_off, c_pad), :]                 # (c_pad, 128) image half
        w0b = w0_ref[pl.ds(r_off + c_pad, D), :]             # (D, 128)     EHR half
        w1t = w1_ref[pl.ds(s * _BN_PAD, _BN_PAD), :]         # (128, 2D)

        pool_s = pool[:, p_off:p_off + c_pad]                # (Bt, c_pad)
        ehr_avg = scale_acc * ehr_avg0 + shift_acc           # mean commutes with FiLM

        # aux_base (no bias) on cat(pool, ehr_avg), split into two dots
        # (same result as a concat + single matmul).
        h = (jnp.dot(pool_s, w0a, preferred_element_type=jnp.float32)
             + jnp.dot(ehr_avg, w0b, preferred_element_type=jnp.float32))
        h = jnp.maximum(h, 0.0)                              # aux_relu
        attn = jnp.dot(h, w1t, preferred_element_type=jnp.float32)   # (Bt, 2D)

        v_scale = attn[:, :D]
        v_shift = attn[:, D:]
        if activation == "sigmoid":
            v_scale = jax.nn.sigmoid(v_scale)
        elif activation == "tanh":
            v_scale = jnp.tanh(v_scale)
        # "linear" -> identity (module default)

        scale_acc = v_scale * scale_acc
        shift_acc = v_scale * shift_acc + v_shift

    # Single FiLM pass over the big (Bt, T, D) slab.
    out_ref[...] = (scale_acc[:, None, :] * xa
                    + shift_acc[:, None, :]).astype(out_ref.dtype)


def _pick_batch_tile(B, max_tile=32):
    """Largest batch tile <= max_tile, preferring an even number of grid steps
    (>= 2) so the "parallel" axis shards across both v7x TensorCores."""
    cands = [bt for bt in range(1, min(B, max_tile) + 1) if B % bt == 0]
    even_steps = [bt for bt in cands if (B // bt) % 2 == 0]
    if even_steps:
        return max(even_steps)
    multi_steps = [bt for bt in cands if B // bt >= 2]
    if multi_steps:
        return max(multi_steps)
    return max(cands)


def fused_daft_forward(x_aux, feature_maps_nchw, w0_packed, w1_packed, stage_meta,
                       *, activation="linear", batch_tile=None):
    """Fused forward of all 5 DAFT stages.

    x_aux             : (B, T, D) EHR sequence
    feature_maps_nchw : list of 5 NCHW CXR feature maps
    w0_packed         : (R0, 128) bf16 packed/padded aux_base weights
    w1_packed         : (640, 2D) bf16 packed/padded aux_out weights
    """
    B, T, D = x_aux.shape
    assert len(feature_maps_nchw) == len(stage_meta)

    # AdaptiveAvgPool2d(1) per stage done here (pure JAX, fuses with the
    # producing ResNet stage); concat + zero-pad channels to 128-multiples so
    # the kernel gets ONE small, lane-aligned input.
    pools = []
    for fm, (c_pad, _, _) in zip(feature_maps_nchw, stage_meta):
        b, c, _, _ = fm.shape
        assert b == B
        p = jnp.mean(fm.astype(jnp.float32), axis=(2, 3))            # (B, C_s)
        pools.append(jnp.pad(p, ((0, 0), (0, c_pad - c))))
    pool_cat = jnp.concatenate(pools, axis=1)[:, None, :]            # (B, 1, Cp)
    c_total = pool_cat.shape[-1]

    bt = _pick_batch_tile(B) if batch_tile is None else batch_tile
    grid = (B // bt,)

    in_specs = [
        pl.BlockSpec((bt, T, D), lambda i: (i, 0, 0)),               # EHR tile
        pl.BlockSpec((bt, 1, c_total), lambda i: (i, 0, 0)),         # pooled CXR
        # Packed weights: constant block index -> fetched once, reused across
        # all grid steps (no per-step re-DMA).
        pl.BlockSpec(w0_packed.shape, lambda i: (0, 0)),
        pl.BlockSpec(w1_packed.shape, lambda i: (0, 0)),
    ]
    out_specs = pl.BlockSpec((bt, T, D), lambda i: (i, 0, 0))

    # Advisory cost estimate: kernel is DMA / launch-overhead bound. Weight
    # bytes counted once (their block index never changes across the grid).
    x_bytes = jnp.dtype(x_aux.dtype).itemsize
    bytes_accessed = (B * T * D * 2 * x_bytes
                      + B * c_total * 4
                      + (int(w0_packed.size) + int(w1_packed.size)) * 2)
    flops = B * T * D * 3                                            # mean + final FiLM
    for c_pad, _, _ in stage_meta:
        flops += B * (2 * c_pad * _BN_PAD + 2 * D * _BN_PAD
                      + 2 * _BN_PAD * 2 * D + 6 * D)
    transcendentals = B * D * len(stage_meta) if activation in ("sigmoid", "tanh") else 0
    cost = pl.CostEstimate(flops=int(flops), transcendentals=int(transcendentals),
                           bytes_accessed=int(bytes_accessed))

    kernel = functools.partial(_fused_daft_kernel, stage_meta=tuple(stage_meta),
                               D=D, activation=activation)

    return pl.pallas_call(
        kernel,
        out_shape=jax.ShapeDtypeStruct((B, T, D), x_aux.dtype),
        grid_spec=pltpu.PrefetchScalarGridSpec(
            num_scalar_prefetch=0,
            grid=grid,
            in_specs=in_specs,
            out_specs=out_specs,
        ),
        compiler_params=pltpu.CompilerParams(
            dimension_semantics=("parallel",)),   # batch tiles -> megacore / v7x TCs
        cost_estimate=cost,
    )(x_aux, pool_cat, w0_packed, w1_packed)


def _init_daft_params(key, in_channels, ndim_non_img, bottleneck_dim):
    """PyTorch nn.Linear default init: U(-1/sqrt(fan_in), 1/sqrt(fan_in)), no bias."""
    k0, k1 = jax.random.split(key)
    fan0 = ndim_non_img + in_channels
    b0 = 1.0 / jnp.sqrt(jnp.float32(fan0))
    w0 = jax.random.uniform(k0, (bottleneck_dim, fan0), jnp.float32, -b0, b0)
    b1 = 1.0 / jnp.sqrt(jnp.float32(bottleneck_dim))
    w1 = jax.random.uniform(k1, (2 * in_channels, bottleneck_dim), jnp.float32, -b1, b1)
    return w0, w1


class FusionDAFTPallas:
    """Pallas version of FusionDAFT's own compute (layer_after == -1)."""

    IN_CHANNELS = 256                       # EHR hidden dim (aux_input_dims / film_dims)
    NDIM_NON_IMG = (64, 64, 128, 256, 512)  # CXR channels per ResNet stage
    BOTTLENECKS = tuple(int((4 * 4 + c) / 7.0) for c in NDIM_NON_IMG)

    def __init__(self, key, daft_activation="linear", weight_dtype=jnp.bfloat16):
        keys = jax.random.split(key, 5)
        self.activation = daft_activation
        D = self.IN_CHANNELS

        raw = [_init_daft_params(keys[i], D, self.NDIM_NON_IMG[i], self.BOTTLENECKS[i])
               for i in range(5)]

        # Explicit accuracy decision: parameters are stored in bf16 (they dominate
        # the kernel's HBM bytes).  Keep an f32 view of the SAME bf16-rounded
        # values for the pure-JAX reference check.
        rounded = [(w0.astype(weight_dtype).astype(jnp.float32),
                    w1.astype(weight_dtype).astype(jnp.float32)) for w0, w1 in raw]
        self.ref_params = rounded

        # Pack / pad once (hoisted out of forward):
        #   aux_base (bneck, C+D) -> transpose -> [img ; ehr] halves, zero-pad C
        #   rows to a 128 multiple and bneck lanes to 128;
        #   aux_out  (2D, bneck)  -> transpose -> zero-pad bneck rows to 128.
        # Zero padding is exact: padded h columns are ReLU(0)=0 and padded
        # aux_out rows are 0.
        w0_blocks, w1_blocks, meta = [], [], []
        pool_off, row_off = 0, 0
        for (w0, w1), C, bn in zip(rounded, self.NDIM_NON_IMG, self.BOTTLENECKS):
            c_pad = _round_up(C, 128)
            w0t = jnp.transpose(w0)                                            # (C+D, bneck)
            img = jnp.zeros((c_pad, _BN_PAD), jnp.float32).at[:C, :bn].set(w0t[:C])
            ehr = jnp.zeros((D, _BN_PAD), jnp.float32).at[:, :bn].set(w0t[C:])
            w1t = jnp.zeros((_BN_PAD, 2 * D), jnp.float32).at[:bn, :].set(jnp.transpose(w1))
            w0_blocks += [img, ehr]
            w1_blocks.append(w1t)
            meta.append((c_pad, pool_off, row_off))
            pool_off += c_pad
            row_off += c_pad + D
        self.w0_packed = jnp.concatenate(w0_blocks, axis=0).astype(weight_dtype)  # (2432, 128)
        self.w1_packed = jnp.concatenate(w1_blocks, axis=0).astype(weight_dtype)  # (640, 512)
        self.stage_meta = tuple(meta)

    def __call__(self, ehr_unpacked, cxr_stage_feats):
        return fused_daft_forward(ehr_unpacked, cxr_stage_feats,
                                  self.w0_packed, self.w1_packed, self.stage_meta,
                                  activation=self.activation)


def _daft_block_ref(feature_map, x_aux, w0, w1, activation="linear"):
    """Pure-JAX reference mirroring DAFTBlock.forward (scale & shift path)."""
    B, C, H, W = feature_map.shape
    D = x_aux.shape[2]
    pool = jnp.mean(feature_map.reshape(B, C, H * W), axis=-1)
    ehr_avg = jnp.mean(x_aux, axis=1)
    s = jnp.concatenate([pool, ehr_avg], axis=1)
    h = jnp.maximum(s @ w0.T, 0.0)
    attn = h @ w1.T
    v_scale, v_shift = attn[:, :D], attn[:, D:]
    if activation == "sigmoid":
        v_scale = jax.nn.sigmoid(v_scale)
    elif activation == "tanh":
        v_scale = jnp.tanh(v_scale)
    return v_scale[:, None, :] * x_aux + v_shift[:, None, :]


if __name__ == "__main__":
    key = jax.random.PRNGKey(0)
    k_model, k_ehr, *k_imgs = jax.random.split(key, 7)

    B, T, D = 2, 8, 256
    ehr_unpacked = jax.random.normal(k_ehr, (B, T, D), jnp.float32)

    # Synthetic CXR feature maps at each ResNet stage (NCHW, small spatial).
    stage_shapes = [
        (B, 64, 16, 16),   # after conv1/bn1/relu/maxpool
        (B, 64, 16, 16),   # after layer1
        (B, 128, 8, 8),    # after layer2
        (B, 256, 4, 4),    # after layer3
        (B, 512, 2, 2),    # after layer4
    ]
    cxr_feats = [jax.random.normal(k, s, jnp.float32)
                 for k, s in zip(k_imgs, stage_shapes)]

    model = FusionDAFTPallas(k_model, daft_activation="linear")

    fused = jax.block_until_ready(model(ehr_unpacked, cxr_feats))

    # Cross-check against a pure-JAX reference of the same forward
    # (same bf16-rounded weights, f32 math, sequential per-stage FiLM).
    ref = ehr_unpacked
    for (w0, w1), fm in zip(model.ref_params, cxr_feats):
        ref = _daft_block_ref(fm, ref, w0, w1, model.activation)

    assert fused.shape == (B, T, D)
    assert fused.dtype == jnp.float32
    max_err = float(jnp.max(jnp.abs(fused - ref)))
    assert jnp.allclose(fused, ref, atol=2e-3, rtol=2e-3), max_err

    print("KERNEL_OK")
</pallas_src>

<mosaic_0001>
module attributes {stable_mosaic.version = 11 : i64} {
  func.func @_fused_daft_kernel(%arg0: i32, %arg1: memref<1x8x256xf32, #tpu.memory_space<vmem>>, %arg2: memref<1x1x1152xf32, #tpu.memory_space<vmem>>, %arg3: memref<2432x128xbf16, #tpu.memory_space<vmem>>, %arg4: memref<640x512xbf16, #tpu.memory_space<vmem>>, %arg5: memref<1x8x256xf32, #tpu.memory_space<vmem>>) attributes {dimension_semantics = [#tpu.dimension_semantics<parallel>], iteration_bounds = array<i64: 2>, scalar_prefetch = 0 : i64, scratch_operands = 0 : i64, tpu.core_type = #tpu.core_type<tc>, window_params = [{transform_indices = @transform_0, window_bounds = array<i64: 1, 8, 256>}, {transform_indices = @transform_1, window_bounds = array<i64: 1, 1, 1152>}, {pipeline_mode = #tpu.pipeline_mode<synchronous>, transform_indices = @transform_2, window_bounds = array<i64: 2432, 128>}, {pipeline_mode = #tpu.pipeline_mode<synchronous>, transform_indices = @transform_3, window_bounds = array<i64: 640, 512>}, {transform_indices = @transform_4, window_bounds = array<i64: 1, 8, 256>}]} {
    %c0 = arith.constant 0 : index
    %c0_0 = arith.constant 0 : index
    %c0_1 = arith.constant 0 : index
    %0 = vector.load %arg1[%c0, %c0_0, %c0_1] : memref<1x8x256xf32, #tpu.memory_space<vmem>>, vector<1x8x256xf32>
    %c0_2 = arith.constant 0 : index
    %c0_3 = arith.constant 0 : index
    %c0_4 = arith.constant 0 : index
    %1 = vector.load %arg2[%c0_2, %c0_3, %c0_4] : memref<1x1x1152xf32, #tpu.memory_space<vmem>>, vector<1x1x1152xf32>
    %2 = vector.shape_cast %1 : vector<1x1x1152xf32> to vector<1x1152xf32>
    %cst = arith.constant dense<0.000000e+00> : vector<1x256xf32>
    %3 = vector.multi_reduction <add>, %0, %cst [1] : vector<1x8x256xf32> to vector<1x256xf32>
    %cst_5 = arith.constant 8.000000e+00 : f32
    %4 = vector.broadcast %cst_5 : f32 to vector<1x256xf32>
    %5 = arith.divf %3, %4 : vector<1x256xf32>
    %cst_6 = arith.constant 1.000000e+00 : f32
    %6 = vector.broadcast %cst_6 : f32 to vector<1x256xf32>
    %cst_7 = arith.constant 0.000000e+00 : f32
    %7 = vector.broadcast %cst_7 : f32 to vector<1x256xf32>
    %c0_8 = arith.constant 0 : index
    %c0_9 = arith.constant 0 : index
    %8 = vector.load %arg3[%c0_8, %c0_9] : memref<2432x128xbf16, #tpu.memory_space<vmem>>, vector<128x128xbf16>
    %c128 = arith.constant 128 : index
    %c0_10 = arith.constant 0 : index
    %9 = vector.load %arg3[%c128, %c0_10] : memref<2432x128xbf16, #tpu.memory_space<vmem>>, vector<256x128xbf16>
    %c0_11 = arith.constant 0 : index
    %c0_12 = arith.constant 0 : index
    %10 = vector.load %arg4[%c0_11, %c0_12] : memref<640x512xbf16, #tpu.memory_space<vmem>>, vector<128x512xbf16>
    %11 = vector.extract_strided_slice %2 {offsets = [0, 0], sizes = [1, 128], strides = [1, 1]} : vector<1x1152xf32> to vector<1x128xf32>
    %12 = arith.mulf %6, %5 : vector<1x256xf32>
    %13 = arith.addf %12, %7 : vector<1x256xf32>
    %cst_13 = arith.constant dense<0.000000e+00> : vector<1x128xf32>
    %14 = tpu.matmul %11, %8, %cst_13 {dimension_numbers = #tpu.dot_dimension_numbers<[1], [0], [0], [1], [0, 0, 1, 1], [], []>} : vector<1x128xf32>, vector<128x128xbf16>, vector<1x128xf32> -> vector<1x128xf32>
    %cst_14 = arith.constant dense<0.000000e+00> : vector<1x128xf32>
    %15 = tpu.matmul %13, %9, %cst_14 {dimension_numbers = #tpu.dot_dimension_numbers<[1], [0], [0], [1], [0, 0, 1, 1], [], []>} : vector<1x256xf32>, vector<256x128xbf16>, vector<1x128xf32> -> vector<1x128xf32>
    %16 = arith.addf %14, %15 : vector<1x128xf32>
    %cst_15 = arith.constant 0.000000e+00 : f32
    %17 = vector.broadcast %cst_15 : f32 to vector<1x128xf32>
    %18 = arith.maximumf %16, %17 : vector<1x128xf32>
    %cst_16 = arith.constant dense<0.000000e+00> : vector<1x512xf32>
    %19 = tpu.matmul %18, %10, %cst_16 {dimension_numbers = #tpu.dot_dimension_numbers<[1], [0], [0], [1], [0, 0, 1, 1], [], []>} : vector<1x128xf32>, vector<128x512xbf16>, vector<1x512xf32> -> vector<1x512xf32>
    %20 = vector.extract_strided_slice %19 {offsets = [0, 0], sizes = [1, 256], strides = [1, 1]} : vector<1x512xf32> to vector<1x256xf32>
    %21 = vector.extract_strided_slice %19 {offsets = [0, 256], sizes = [1, 256], strides = [1, 1]} : vector<1x512xf32> to vector<1x256xf32>
    %22 = arith.mulf %20, %6 : vector<1x256xf32>
    %23 = arith.mulf %20, %7 : vector<1x256xf32>
    %24 = arith.addf %23, %21 : vector<1x256xf32>
    %c384 = arith.constant 384 : index
    %c0_17 = arith.constant 0 : index
    %25 = vector.load %arg3[%c384, %c0_17] : memref<2432x128xbf16, #tpu.memory_space<vmem>>, vector<128x128xbf16>
    %c512 = arith.constant 512 : index
    %c0_18 = arith.constant 0 : index
    %26 = vector.load %arg3[%c512, %c0_18] : memref<2432x128xbf16, #tpu.memory_space<vmem>>, vector<256x128xbf16>
    %c128_19 = arith.constant 128 : index
    %c0_20 = arith.constant 0 : index
    %27 = vector.load %arg4[%c128_19, %c0_20] : memref<640x512xbf16, #tpu.memory_space<vmem>>, vector<128x512xbf16>
    %28 = vector.extract_strided_slice %2 {offsets = [0, 128], sizes = [1, 128], strides = [1, 1]} : vector<1x1152xf32> to vector<1x128xf32>
    %29 = arith.mulf %22, %5 : vector<1x256xf32>
    %30 = arith.addf %29, %24 : vector<1x256xf32>
    %cst_21 = arith.constant dense<0.000000e+00> : vector<1x128xf32>
    %31 = tpu.matmul %28, %25, %cst_21 {dimension_numbers = #tpu.dot_dimension_numbers<[1], [0], [0], [1], [0, 0, 1, 1], [], []>} : vector<1x128xf32>, vector<128x128xbf16>, vector<1x128xf32> -> vector<1x128xf32>
    %cst_22 = arith.constant dense<0.000000e+00> : vector<1x128xf32>
    %32 = tpu.matmul %30, %26, %cst_22 {dimension_numbers = #tpu.dot_dimension_numbers<[1], [0], [0], [1], [0, 0, 1, 1], [], []>} : vector<1x256xf32>, vector<256x128xbf16>, vector<1x128xf32> -> vector<1x128xf32>
    %33 = arith.addf %31, %32 : vector<1x128xf32>
    %cst_23 = arith.constant 0.000000e+00 : f32
    %34 = vector.broadcast %cst_23 : f32 to vector<1x128xf32>
    %35 = arith.maximumf %33, %34 : vector<1x128xf32>
    %cst_24 = arith.constant dense<0.000000e+00> : vector<1x512xf32>
    %36 = tpu.matmul %35, %27, %cst_24 {dimension_numbers = #tpu.dot_dimension_numbers<[1], [0], [0], [1], [0, 0, 1, 1], [], []>} : vector<1x128xf32>, vector<128x512xbf16>, vector<1x512xf32> -> vector<1x512xf32>
    %37 = vector.extract_strided_slice %36 {offsets = [0, 0], sizes = [1, 256], strides = [1, 1]} : vector<1x512xf32> to vector<1x256xf32>
    %38 = vector.extract_strided_slice %36 {offsets = [0, 256], sizes = [1, 256], strides = [1, 1]} : vector<1x512xf32> to vector<1x256xf32>
    %39 = arith.mulf %37, %22 : vector<1x256xf32>
    %40 = arith.mulf %37, %24 : vector<1x256xf32>
    %41 = arith.addf %40, %38 : vector<1x256xf32>
    %c768 = arith.constant 768 : index
    %c0_25 = arith.constant 0 : index
    %42 = vector.load %arg3[%c768, %c0_25] : memref<2432x128xbf16, #tpu.memory_space<vmem>>, vector<128x128xbf16>
    %c896 = arith.constant 896 : index
    %c0_26 = arith.constant 0 : index
    %43 = vector.load %arg3[%c896, %c0_26] : memref<2432x128xbf16, #tpu.memory_space<vmem>>, vector<256x128xbf16>
    %c256 = arith.constant 256 : index
    %c0_27 = arith.constant 0 : index
    %44 = vector.load %arg4[%c256, %c0_27] : memref<640x512xbf16, #tpu.memory_space<vmem>>, vector<128x512xbf16>
    %45 = vector.extract_strided_slice %2 {offsets = [0, 256], sizes = [1, 128], strides = [1, 1]} : vector<1x1152xf32> to vector<1x128xf32>
    %46 = arith.mulf %39, %5 : vector<1x256xf32>
    %47 = arith.addf %46, %41 : vector<1x256xf32>
    %cst_28 = arith.constant dense<0.000000e+00> : vector<1x128xf32>
    %48 = tpu.matmul %45, %42, %cst_28 {dimension_numbers = #tpu.dot_dimension_numbers<[1], [0], [0], [1], [0, 0, 1, 1], [], []>} : vector<1x128xf32>, vector<128x128xbf16>, vector<1x128xf32> -> vector<1x128xf32>
    %cst_29 = arith.constant dense<0.000000e+00> : vector<1x128xf32>
    %49 = tpu.matmul %47, %43, %cst_29 {dimension_numbers = #tpu.dot_dimension_numbers<[1], [0], [0], [1], [0, 0, 1, 1], [], []>} : vector<1x256xf32>, vector<256x128xbf16>, vector<1x128xf32> -> vector<1x128xf32>
    %50 = arith.addf %48, %49 : vector<1x128xf32>
    %cst_30 = arith.constant 0.000000e+00 : f32
    %51 = vector.broadcast %cst_30 : f32 to vector<1x128xf32>
    %52 = arith.maximumf %50, %51 : vector<1x128xf32>
    %cst_31 = arith.constant dense<0.000000e+00> : vector<1x512xf32>
    %53 = tpu.matmul %52, %44, %cst_31 {dimension_numbers = #tpu.dot_dimension_numbers<[1], [0], [0], [1], [0, 0, 1, 1], [], []>} : vector<1x128xf32>, vector<128x512xbf16>, vector<1x512xf32> -> vector<1x512xf32>
    %54 = vector.extract_strided_slice %53 {offsets = [0, 0], sizes = [1, 256], strides = [1, 1]} : vector<1x512xf32> to vector<1x256xf32>
    %55 = vector.extract_strided_slice %53 {offsets = [0, 256], sizes = [1, 256], strides = [1, 1]} : vector<1x512xf32> to vector<1x256xf32>
    %56 = arith.mulf %54, %39 : vector<1x256xf32>
    %57 = arith.mulf %54, %41 : vector<1x256xf32>
    %58 = arith.addf %57, %55 : vector<1x256xf32>
    %c1152 = arith.constant 1152 : index
    %c0_32 = arith.constant 0 : index
    %59 = vector.load %arg3[%c1152, %c0_32] : memref<2432x128xbf16, #tpu.memory_space<vmem>>, vector<256x128xbf16>
    %c1408 = arith.constant 1408 : index
    %c0_33 = arith.constant 0 : index
    %60 = vector.load %arg3[%c1408, %c0_33] : memref<2432x128xbf16, #tpu.memory_space<vmem>>, vector<256x128xbf16>
    %c384_34 = arith.constant 384 : index
    %c0_35 = arith.constant 0 : index
    %61 = vector.load %arg4[%c384_34, %c0_35] : memref<640x512xbf16, #tpu.memory_space<vmem>>, vector<128x512xbf16>
    %62 = vector.extract_strided_slice %2 {offsets = [0, 384], sizes = [1, 256], strides = [1, 1]} : vector<1x1152xf32> to vector<1x256xf32>
    %63 = arith.mulf %56, %5 : vector<1x256xf32>
    %64 = arith.addf %63, %58 : vector<1x256xf32>
    %cst_36 = arith.constant dense<0.000000e+00> : vector<1x128xf32>
    %65 = tpu.matmul %62, %59, %cst_36 {dimension_numbers = #tpu.dot_dimension_numbers<[1], [0], [0], [1], [0, 0, 1, 1], [], []>} : vector<1x256xf32>, vector<256x128xbf16>, vector<1x128xf32> -> vector<1x128xf32>
    %cst_37 = arith.constant dense<0.000000e+00> : vector<1x128xf32>
    %66 = tpu.matmul %64, %60, %cst_37 {dimension_numbers = #tpu.dot_dimension_numbers<[1], [0], [0], [1], [0, 0, 1, 1], [], []>} : vector<1x256xf32>, vector<256x128xbf16>, vector<1x128xf32> -> vector<1x128xf32>
    %67 = arith.addf %65, %66 : vector<1x128xf32>
    %cst_38 = arith.constant 0.000000e+00 : f32
    %68 = vector.broadcast %cst_38 : f32 to vector<1x128xf32>
    %69 = arith.maximumf %67, %68 : vector<1x128xf32>
    %cst_39 = arith.constant dense<0.000000e+00> : vector<1x512xf32>
    %70 = tpu.matmul %69, %61, %cst_39 {dimension_numbers = #tpu.dot_dimension_numbers<[1], [0], [0], [1], [0, 0, 1, 1], [], []>} : vector<1x128xf32>, vector<128x512xbf16>, vector<1x512xf32> -> vector<1x512xf32>
    %71 = vector.extract_strided_slice %70 {offsets = [0, 0], sizes = [1, 256], strides = [1, 1]} : vector<1x512xf32> to vector<1x256xf32>
    %72 = vector.extract_strided_slice %70 {offsets = [0, 256], sizes = [1, 256], strides = [1, 1]} : vector<1x512xf32> to vector<1x256xf32>
    %73 = arith.mulf %71, %56 : vector<1x256xf32>
    %74 = arith.mulf %71, %58 : vector<1x256xf32>
    %75 = arith.addf %74, %72 : vector<1x256xf32>
    %c1664 = arith.constant 1664 : index
    %c0_40 = arith.constant 0 : index
    %76 = vector.load %arg3[%c1664, %c0_40] : memref<2432x128xbf16, #tpu.memory_space<vmem>>, vector<512x128xbf16>
    %c2176 = arith.constant 2176 : index
    %c0_41 = arith.constant 0 : index
    %77 = vector.load %arg3[%c2176, %c0_41] : memref<2432x128xbf16, #tpu.memory_space<vmem>>, vector<256x128xbf16>
    %c512_42 = arith.constant 512 : index
    %c0_43 = arith.constant 0 : index
    %78 = vector.load %arg4[%c512_42, %c0_43] : memref<640x512xbf16, #tpu.memory_space<vmem>>, vector<128x512xbf16>
    %79 = vector.extract_strided_slice %2 {offsets = [0, 640], sizes = [1, 512], strides = [1, 1]} : vector<1x1152xf32> to vector<1x512xf32>
    %80 = arith.mulf %73, %5 : vector<1x256xf32>
    %81 = arith.addf %80, %75 : vector<1x256xf32>
    %cst_44 = arith.constant dense<0.000000e+00> : vector<1x128xf32>
    %82 = tpu.matmul %79, %76, %cst_44 {dimension_numbers = #tpu.dot_dimension_numbers<[1], [0], [0], [1], [0, 0, 1, 1], [], []>} : vector<1x512xf32>, vector<512x128xbf16>, vector<1x128xf32> -> vector<1x128xf32>
    %cst_45 = arith.constant dense<0.000000e+00> : vector<1x128xf32>
    %83 = tpu.matmul %81, %77, %cst_45 {dimension_numbers = #tpu.dot_dimension_numbers<[1], [0], [0], [1], [0, 0, 1, 1], [], []>} : vector<1x256xf32>, vector<256x128xbf16>, vector<1x128xf32> -> vector<1x128xf32>
    %84 = arith.addf %82, %83 : vector<1x128xf32>
    %cst_46 = arith.constant 0.000000e+00 : f32
    %85 = vector.broadcast %cst_46 : f32 to vector<1x128xf32>
    %86 = arith.maximumf %84, %85 : vector<1x128xf32>
    %cst_47 = arith.constant dense<0.000000e+00> : vector<1x512xf32>
    %87 = tpu.matmul %86, %78, %cst_47 {dimension_numbers = #tpu.dot_dimension_numbers<[1], [0], [0], [1], [0, 0, 1, 1], [], []>} : vector<1x128xf32>, vector<128x512xbf16>, vector<1x512xf32> -> vector<1x512xf32>
    %88 = vector.extract_strided_slice %87 {offsets = [0, 0], sizes = [1, 256], strides = [1, 1]} : vector<1x512xf32> to vector<1x256xf32>
    %89 = vector.extract_strided_slice %87 {offsets = [0, 256], sizes = [1, 256], strides = [1, 1]} : vector<1x512xf32> to vector<1x256xf32>
    %90 = arith.mulf %88, %73 : vector<1x256xf32>
    %91 = arith.mulf %88, %75 : vector<1x256xf32>
    %92 = arith.addf %91, %89 : vector<1x256xf32>
    %93 = vector.shape_cast %90 : vector<1x256xf32> to vector<1x1x256xf32>
    %94 = vector.broadcast %93 : vector<1x1x256xf32> to vector<1x8x256xf32>
    %95 = arith.mulf %94, %0 : vector<1x8x256xf32>
    %96 = vector.shape_cast %92 : vector<1x256xf32> to vector<1x1x256xf32>
    %97 = vector.broadcast %96 : vector<1x1x256xf32> to vector<1x8x256xf32>
    %98 = arith.addf %95, %97 : vector<1x8x256xf32>
    %c0_48 = arith.constant 0 : index
    %c0_49 = arith.constant 0 : index
    %c0_50 = arith.constant 0 : index
    %99 = vector.load %arg5[%c0_48, %c0_49, %c0_50] : memref<1x8x256xf32, #tpu.memory_space<vmem>>, vector<1x8x256xf32>
    tpu.vector_store %arg5[%c0_48, %c0_49, %c0_50], %98 {strides = array<i32>} : memref<1x8x256xf32, #tpu.memory_space<vmem>>, vector<1x8x256xf32>,
    return
  }
  func.func @transform_0(%arg0: i32) -> (i32, i32, i32) {
    %c0_i32 = arith.constant 0 : i32
    %c0_i32_0 = arith.constant 0 : i32
    %c0_i32_1 = arith.constant 0 : i32
    return %arg0, %c0_i32, %c0_i32_0 : i32, i32, i32
  }
  func.func @transform_1(%arg0: i32) -> (i32, i32, i32) {
    %c0_i32 = arith.constant 0 : i32
    %c0_i32_0 = arith.constant 0 : i32
    %c0_i32_1 = arith.constant 0 : i32
    return %arg0, %c0_i32, %c0_i32_0 : i32, i32, i32
  }
  func.func @transform_2(%arg0: i32) -> (i32, i32) {
    %c0_i32 = arith.constant 0 : i32
    %c0_i32_0 = arith.constant 0 : i32
    %c0_i32_1 = arith.constant 0 : i32
    return %c0_i32, %c0_i32_0 : i32, i32
  }
  func.func @transform_3(%arg0: i32) -> (i32, i32) {
    %c0_i32 = arith.constant 0 : i32
    %c0_i32_0 = arith.constant 0 : i32
    %c0_i32_1 = arith.constant 0 : i32
    return %c0_i32, %c0_i32_0 : i32, i32
  }
  func.func @transform_4(%arg0: i32) -> (i32, i32, i32) {
    %c0_i32 = arith.constant 0 : i32
    %c0_i32_0 = arith.constant 0 : i32
    %c0_i32_1 = arith.constant 0 : i32
    return %arg0, %c0_i32, %c0_i32_0 : i32, i32, i32
  }
}

</mosaic_0001>

<llo_original>
// kernel: tpu_custom_call.1
$region0: #{tpu_custom_call.1}
  #allocation0 [shape = 'u32[]', space=smem, size = 0x4, offset = 0x4, fixed_abs, tag = 'smem constant byte address 0x4 - core index']
  #allocation1 [shape = 'u32[72,128]{1,0:T(1,128)}', space=vmem, size = 0x9000, scoped, tag = 'internal scratch']
  %s0 = inlined_call_operand.hbm [shape: f32[2,8,256], index: 0, kind: input, shape index: {}]
  %s1 = inlined_call_operand.hbm [shape: f32[2,1,1152], index: 1, kind: input, shape index: {}]
  %s2 = inlined_call_operand.hbm [shape: bf16[2432,128], index: 2, kind: input, shape index: {}]
  %s3 = inlined_call_operand.hbm [shape: bf16[640,512], index: 3, kind: input, shape index: {}]
  %s4 = inlined_call_operand.hbm [shape: f32[2,8,256], index: 4, kind: output, shape index: {}]
  %s5 = sld [smem:[#allocation0]]
  $region65: #{tpu_custom_call.1} parent=0
    _
  %s7 = ssub.s32 1, %s5
  %s8 = scalar_select 0, %s7, %s5
  $region1: #{tpu_custom_call.1} parent=0
    #allocation2 [shape = 'u8[16384]{0}', space=vmem, size = 0x4000, scoped, tag = 'input window, operand 0']
    #allocation3 [shape = 's32[2]{0}', space=sflag, size = 0x8, scoped, tag = 'scoped memory for tpu_custom_call.1']
    #allocation4 [shape = 's32[2]{0}', space=sflag, size = 0x8, scoped, tag = 'scoped memory for tpu_custom_call.1']
    #allocation5 [shape = 'u8[9216]{0}', space=vmem, size = 0x2400, scoped, tag = 'input window, operand 1']
    #allocation6 [shape = 's32[2]{0}', space=sflag, size = 0x8, scoped, tag = 'scoped memory for tpu_custom_call.1']
    #allocation7 [shape = 'u8[622592]{0}', space=vmem, size = 0x98000, scoped, tag = 'input window, operand 2, single buffered']
    #allocation8 [shape = 'u8[655360]{0}', space=vmem, size = 0xa0000, scoped, tag = 'input window, operand 3, single buffered']
    #allocation9 [shape = 's32[1]{0}', space=sflag, size = 0x4, scoped, tag = 'scoped memory for tpu_custom_call.1']
    #allocation10 [shape = 'u8[16384]{0}', space=vmem, size = 0x4000, scoped, tag = 'output window, operand 0']
    %9 = vsyncpa [#allocation3], 0
    %s10 = scalar_lea.sflag [#allocation3], 1
    %11 = vsyncpa %s10, 0
    %12 = vsyncpa [#allocation6], 0
    %s13 = scalar_lea.sflag [#allocation6], 1
    %14 = vsyncpa %s13, 0
    %15 = vsyncpa [#allocation9], 0
    %16 = vsyncpa [#allocation4], 0
    %s17 = scalar_lea.sflag [#allocation4], 1
    %18 = vsyncpa %s17, 0
    loop: start=0, step=1, limit=4
    $region2: #{tpu_custom_call.1} parent=1 // loop_pre_header
      _
    $region3: #{tpu_custom_call.1} parent=1 // loop_header
      %s20 = sphi 0, %s24
      %p21 = scmp.ge.s32.totalorder %s20, 4
      %s30 = sphi 0, %s32
      %s33 = sphi 0, %s30
      %s34 = sphi 0, %s33
      %s50 = sphi 0, %s34
      %s56 = sphi 0, %s58
      %s59 = sphi 0, %s56
      %s60 = sphi 0, %s59
      %s76 = sphi 0, %s60
      %s80 = sphi 0, %s80
      %s82 = sphi 0, %s80
      %s83 = sphi 0, %s82
      %s97 = sphi 0, %s83
      %s101 = sphi 0, %s101
      %s103 = sphi 0, %s101
      %s104 = sphi 0, %s103
      %s118 = sphi 0, %s104
      %s124 = sphi 0, %s126
      %s127 = sphi 0, %s124
      %s128 = sphi 0, %s127
      %s144 = sphi 0, %s128
    $region4: #{tpu_custom_call.1} parent=1 // loop_header_branch
      %23 = sbr.rel (%p21) target = $region8
    $region5: #{tpu_custom_call.1} parent=1 // loop_body
      %s25 = ssub.s32 %s20, 1
      %s26 = ssub.s32 %s20, 2
      %s27 = sadd.s32 %s20, 1
      %s28 = ssub.s32 %s20, %s27
      %p29 = scmp.eq.s32.totalorder %s28, 0
      %s31 = sadd.s32 %s30, 1
      %s32 = scalar_select %p29, %s30, %s31
      %p35 = pneg %p29
      %p36 = scmp.eq.s32.totalorder %s20, 1
      %p37 = por %p35, %p36
      %p38 = scmp.ne.s32.totalorder %s30, %s33
      %p39 = scmp.eq.s32.totalorder %s20, 0
      %p40 = por %p38, %p39
      %p41 = scmp.ne.s32.totalorder %s30, %s33
      %p42 = scmp.eq.s32.totalorder %s25, 1
      %p43 = por %p41, %p42
      %p44 = scmp.ne.s32.totalorder %s33, %s34
      %p45 = scmp.eq.s32.totalorder %s25, 0
      %p46 = por %p44, %p45
      %p47 = scmp.ne.s32.totalorder %s33, %s34
      %p48 = scmp.eq.s32.totalorder %s26, 1
      %p49 = por %p47, %p48
      %p51 = scmp.ne.s32.totalorder %s34, %s50
      %p52 = scmp.eq.s32.totalorder %s26, 0
      %p53 = por %p51, %p52
      %s54 = ssub.s32 %s20, %s27
      %p55 = scmp.eq.s32.totalorder %s54, 0
      %s57 = sadd.s32 %s56, 1
      %s58 = scalar_select %p55, %s56, %s57
      %p61 = pneg %p55
      %p62 = scmp.eq.s32.totalorder %s20, 1
      %p63 = por %p61, %p62
      %p64 = scmp.ne.s32.totalorder %s56, %s59
      %p65 = scmp.eq.s32.totalorder %s20, 0
      %p66 = por %p64, %p65
      %p67 = scmp.ne.s32.totalorder %s56, %s59
      %p68 = scmp.eq.s32.totalorder %s25, 1
      %p69 = por %p67, %p68
      %p70 = scmp.ne.s32.totalorder %s59, %s60
      %p71 = scmp.eq.s32.totalorder %s25, 0
      %p72 = por %p70, %p71
      %p73 = scmp.ne.s32.totalorder %s59, %s60
      %p74 = scmp.eq.s32.totalorder %s26, 1
      %p75 = por %p73, %p74
      %p77 = scmp.ne.s32.totalorder %s60, %s76
      %p78 = scmp.eq.s32.totalorder %s26, 0
      %p79 = por %p77, %p78
      %s81 = sadd.s32 %s80, 1
      %p84 = scmp.eq.s32.totalorder %s20, 1
      %p85 = scmp.ne.s32.totalorder %s80, %s82
      %p86 = scmp.eq.s32.totalorder %s20, 0
      %p87 = por %p85, %p86
      %p88 = scmp.ne.s32.totalorder %s80, %s82
      %p89 = scmp.eq.s32.totalorder %s25, 1
      %p90 = por %p88, %p89
      %p91 = scmp.ne.s32.totalorder %s82, %s83
      %p92 = scmp.eq.s32.totalorder %s25, 0
      %p93 = por %p91, %p92
      %p94 = scmp.ne.s32.totalorder %s82, %s83
      %p95 = scmp.eq.s32.totalorder %s26, 1
      %p96 = por %p94, %p95
      %p98 = scmp.ne.s32.totalorder %s83, %s97
      %p99 = scmp.eq.s32.totalorder %s26, 0
      %p100 = por %p98, %p99
      %s102 = sadd.s32 %s101, 1
      %p105 = scmp.eq.s32.totalorder %s20, 1
      %p106 = scmp.ne.s32.totalorder %s101, %s103
      %p107 = scmp.eq.s32.totalorder %s20, 0
      %p108 = por %p106, %p107
      %p109 = scmp.ne.s32.totalorder %s101, %s103
      %p110 = scmp.eq.s32.totalorder %s25, 1
      %p111 = por %p109, %p110
      %p112 = scmp.ne.s32.totalorder %s103, %s104
      %p113 = scmp.eq.s32.totalorder %s25, 0
      %p114 = por %p112, %p113
      %p115 = scmp.ne.s32.totalorder %s103, %s104
      %p116 = scmp.eq.s32.totalorder %s26, 1
      %p117 = por %p115, %p116
      %p119 = scmp.ne.s32.totalorder %s104, %s118
      %p120 = scmp.eq.s32.totalorder %s26, 0
      %p121 = por %p119, %p120
      %s122 = ssub.s32 %s20, %s27
      %p123 = scmp.eq.s32.totalorder %s122, 0
      %s125 = sadd.s32 %s124, 1
      %s126 = scalar_select %p123, %s124, %s125
      %p129 = pneg %p123
      %p130 = scmp.eq.s32.totalorder %s20, 1
      %p131 = por %p129, %p130
      %p132 = scmp.ne.s32.totalorder %s124, %s127
      %p133 = scmp.eq.s32.totalorder %s20, 0
      %p134 = por %p132, %p133
      %p135 = scmp.ne.s32.totalorder %s124, %s127
      %p136 = scmp.eq.s32.totalorder %s25, 1
      %p137 = por %p135, %p136
      %p138 = scmp.ne.s32.totalorder %s127, %s128
      %p139 = scmp.eq.s32.totalorder %s25, 0
      %p140 = por %p138, %p139
      %p141 = scmp.ne.s32.totalorder %s127, %s128
      %p142 = scmp.eq.s32.totalorder %s26, 1
      %p143 = por %p141, %p142
      %p145 = scmp.ne.s32.totalorder %s128, %s144
      %p146 = scmp.eq.s32.totalorder %s26, 0
      %p147 = por %p145, %p146
      %p148 = scmp.le.s32.totalorder 1, %s20
      %p149 = scmp.lt.s32.totalorder %s20, 3
      %p150 = pnand %p148, %p149
      %p151 = pneg %p150
      // Predicated region
      $region9: #{tpu_custom_call.1} parent=5 // pred_check
        _
      $region10: #{tpu_custom_call.1} parent=5 // pred_check_branch
        %153 = sbr.rel (%p150) target = $region12
      $region11: #{tpu_custom_call.1} parent=5 // pred_region
        %s154 = ssub.s32 %s20, 1
        // Predicated region
        $region13: #{tpu_custom_call.1} parent=11 // pred_check
          %p155 = pneg %p93
        $region14: #{tpu_custom_call.1} parent=11 // pred_check_branch
          %157 = sbr.rel (%p155) target = $region16
        $region15: #{tpu_custom_call.1} parent=11 // pred_region
          %159 = vsyncadd [#allocation6], 0
          %s160 = sshll.u32 %s2, 4
          %s161 = int_to_ptr.hbm [resolvable:$true] %s160
          %s162 = sshll.u32 [#allocation7], 4
          %s163 = int_to_ptr.vmem [resolvable:$true] %s162
          %168 = dma.hbm_to_vmem [thread:$0]  %s161, 19456, %s163, [#allocation6], 64, 64, 4
        $region16: #{tpu_custom_call.1} parent=11 // pred_fallthru
          _
        // Predicated region
        $region17: #{tpu_custom_call.1} parent=11 // pred_check
          %p169 = pneg %p114
        $region18: #{tpu_custom_call.1} parent=11 // pred_check_branch
          %171 = sbr.rel (%p169) target = $region20
        $region19: #{tpu_custom_call.1} parent=11 // pred_region
          %173 = vsyncadd [#allocation9], 0
          %s174 = sshll.u32 %s3, 4
          %s175 = int_to_ptr.hbm [resolvable:$true] %s174
          %s176 = sshll.u32 [#allocation8], 4
          %s177 = int_to_ptr.vmem [resolvable:$true] %s176
          %182 = dma.hbm_to_vmem [thread:$0]  %s175, 20480, %s177, [#allocation9], 256, 256, 16
        $region20: #{tpu_custom_call.1} parent=11 // pred_fallthru
          _
      $region12: #{tpu_custom_call.1} parent=5 // pred_fallthru
        _
      %p183 = scmp.lt.s32.totalorder %s20, 2
      // Predicated region
      $region21: #{tpu_custom_call.1} parent=5 // pred_check
        %p184 = pneg %p183
      $region22: #{tpu_custom_call.1} parent=5 // pred_check_branch
        %186 = sbr.rel (%p184) target = $region24
      $region23: #{tpu_custom_call.1} parent=5 // pred_region
        // Predicated region
        $region25: #{tpu_custom_call.1} parent=23 // pred_check
          %p187 = pneg %p40
        $region26: #{tpu_custom_call.1} parent=23 // pred_check_branch
          %189 = sbr.rel (%p187) target = $region28
        $region27: #{tpu_custom_call.1} parent=23 // pred_region
          %s190 = sand.u32 %s30, 1
          %s191 = scalar_lea.sflag [#allocation3], %s190
          %s192 = sand.u32 %s30, 1
          %s193 = smul.addr %s192, 16
          %s194 = scalar_lea.vmem [#allocation2], %s193
          %196 = vsyncadd %s191, 0
          %s197 = smul.addr %s20, 2
          %s198 = smul.addr %s197, 8
          %s199 = scalar_lea.hbm %s0, %s198
          %s201 = sshll.u32 %s199, 4
          %s202 = int_to_ptr.hbm [resolvable:$true] %s201
          %s203 = sshll.u32 %s194, 4
          %s204 = int_to_ptr.vmem [resolvable:$true] %s203
          %206 = dma.hbm_to_vmem [thread:$0]  %s202, 256, %s204, %s191
        $region28: #{tpu_custom_call.1} parent=23 // pred_fallthru
          _
        // Predicated region
        $region29: #{tpu_custom_call.1} parent=23 // pred_check
          %p207 = pneg %p66
        $region30: #{tpu_custom_call.1} parent=23 // pred_check_branch
          %209 = sbr.rel (%p207) target = $region32
        $region31: #{tpu_custom_call.1} parent=23 // pred_region
          %s210 = sand.u32 %s20, 1
          %s211 = scalar_lea.sflag [#allocation6], %s210
          %s212 = sand.u32 %s56, 1
          %s213 = smul.addr %s212, 9
          %s214 = scalar_lea.vmem [#allocation5], %s213
          %216 = vsyncadd %s211, 0
          %s217 = smul.addr %s20, 9
          %s218 = scalar_lea.hbm %s1, %s217
          %s220 = sshll.u32 %s218, 4
          %s221 = int_to_ptr.hbm [resolvable:$true] %s220
          %s222 = sshll.u32 %s214, 4
          %s223 = int_to_ptr.vmem [resolvable:$true] %s222
          %225 = dma.hbm_to_vmem [thread:$0]  %s221, 144, %s223, %s211
        $region32: #{tpu_custom_call.1} parent=23 // pred_fallthru
          _
      $region24: #{tpu_custom_call.1} parent=5 // pred_fallthru
        _
      %p226 = scmp.le.s32.totalorder 1, %s20
      %p227 = scmp.lt.s32.totalorder %s20, 3
      %p228 = pnand %p226, %p227
      %p229 = pneg %p228
      // Predicated region
      $region33: #{tpu_custom_call.1} parent=5 // pred_check
        _
      $region34: #{tpu_custom_call.1} parent=5 // pred_check_branch
        %231 = sbr.rel (%p228) target = $region36
      $region35: #{tpu_custom_call.1} parent=5 // pred_region
        %s232 = ssub.s32 %s20, 1
        %s233 = sand.u32 %s33, 1
        %s234 = scalar_lea.sflag [#allocation3], %s233
        %s235 = sand.u32 %s33, 1
        %s236 = smul.addr %s235, 16
        %s237 = scalar_lea.vmem [#allocation2], %s236
        // Predicated region
        $region37: #{tpu_custom_call.1} parent=35 // pred_check
          %p238 = pneg %p46
        $region38: #{tpu_custom_call.1} parent=35 // pred_check_branch
          %240 = sbr.rel (%p238) target = $region40
        $region39: #{tpu_custom_call.1} parent=35 // pred_region
          %242 = dma.done %s234, 256
        $region40: #{tpu_custom_call.1} parent=35 // pred_fallthru
          _
        %s243 = sand.u32 %s25, 1
        %s244 = scalar_lea.sflag [#allocation6], %s243
        %s245 = sand.u32 %s59, 1
        %s246 = smul.addr %s245, 9
        %s247 = scalar_lea.vmem [#allocation5], %s246
        // Predicated region
        $region41: #{tpu_custom_call.1} parent=35 // pred_check
          %p248 = pneg %p72
        $region42: #{tpu_custom_call.1} parent=35 // pred_check_branch
          %250 = sbr.rel (%p248) target = $region44
        $region43: #{tpu_custom_call.1} parent=35 // pred_region
          %252 = dma.done %s244, 144
        $region44: #{tpu_custom_call.1} parent=35 // pred_fallthru
          _
        // Predicated region
        $region45: #{tpu_custom_call.1} parent=35 // pred_check
          %p253 = pneg %p93
        $region46: #{tpu_custom_call.1} parent=35 // pred_check_branch
          %255 = sbr.rel (%p253) target = $region48
        $region47: #{tpu_custom_call.1} parent=35 // pred_region
          %257 = dma.done [#allocation6], 19456
        $region48: #{tpu_custom_call.1} parent=35 // pred_fallthru
          _
        // Predicated region
        $region49: #{tpu_custom_call.1} parent=35 // pred_check
          %p258 = pneg %p114
        $region50: #{tpu_custom_call.1} parent=35 // pred_check_branch
          %260 = sbr.rel (%p258) target = $region52
        $region51: #{tpu_custom_call.1} parent=35 // pred_region
          %262 = dma.done [#allocation9], 20480
        $region52: #{tpu_custom_call.1} parent=35 // pred_fallthru
          _
        %s263 = sand.u32 %s33, 1
        %s264 = scalar_lea.sflag [#allocation3], %s263
        %s265 = sand.u32 %s33, 1
        %s266 = smul.addr %s265, 16
        %s267 = scalar_lea.vmem [#allocation2], %s266
        %p268 = pneg %p46
        %p269 = pneg %p43
        %s270 = sand.u32 %s25, 1
        %s271 = scalar_lea.sflag [#allocation6], %s270
        %s272 = sand.u32 %s59, 1
        %s273 = smul.addr %s272, 9
        %s274 = scalar_lea.vmem [#allocation5], %s273
        %p275 = pneg %p72
        %p276 = pneg %p69
        %p277 = pneg %p93
        %p278 = pneg %p90
        %p279 = pneg %p114
        %p280 = pneg %p111
        %p281 = pneg %p140
        %p282 = pneg %p137
        %s283 = sand.u32 %s127, 1
        %s284 = scalar_lea.sflag [#allocation4], %s283
        %s285 = sand.u32 %s127, 1
        %s286 = smul.addr %s285, 16
        %s287 = scalar_lea.vmem [#allocation10], %s286
        %v288 = vld [vmem:[%s237] sm:$0xff]
        %v289 = vld [vmem:[%s237 + $0x8] sm:$0xff]
        %v290 = vld [vmem:[%s247] sm:$0xff]
        %v291 = vld [vmem:[%s247 + $0x8] sm:$0x1]
        %v292 = vrot.slane %v288, 4
        %v293 = vadd.f32 %v288, %v292
        %v294 = vrot.slane %v293, 2
        %v295 = vadd.f32 %v293, %v294
        %v296 = vrot.slane %v295, 1
        %v297 = vadd.f32 %v295, %v296
        %v298 = vrot.slane %v289, 4
        %v299 = vadd.f32 %v289, %v298
        %v300 = vrot.slane %v299, 2
        %v301 = vadd.f32 %v299, %v300
        %v302 = vrot.slane %v301, 1
        %v303 = vadd.f32 %v301, %v302
        %v304 = vrcp.pop 8.0
        %v305 = vmul.f32 8.0, %v304
        %v306 = vsub.f32 1.0, %v305
        %v307 = vmul.f32 %v304, %v306
        %v308 = vadd.f32 %v304, %v307
        %vm309 = vweird.f32 %v304
        %v310 = vsel %vm309, %v304, %v308
        %v311 = vmul.f32 %v297, %v310
        %v312 = vmul.f32 %v303, %v310
        %v313 = vld [vmem:[#allocation7] sm:$0xf]
        %v314 = vld [vmem:[#allocation7 + $0x4] sm:$0xf]
        %v315 = vld [vmem:[#allocation7 + $0x8] sm:$0xf]
        %v316 = vld [vmem:[#allocation7 + $0xc] sm:$0xf]
        %v317 = vld [vmem:[#allocation7 + $0x10] sm:$0xf]
        %v318 = vld [vmem:[#allocation7 + $0x14] sm:$0xf]
        %v319 = vld [vmem:[#allocation7 + $0x18] sm:$0xf]
        %v320 = vld [vmem:[#allocation7 + $0x1c] sm:$0xf]
        %v321 = vld [vmem:[#allocation7 + $0x20] sm:$0xf]
        %v322 = vld [vmem:[#allocation7 + $0x24] sm:$0xf]
        %v323 = vld [vmem:[#allocation7 + $0x28] sm:$0xf]
        %v324 = vld [vmem:[#allocation7 + $0x2c] sm:$0xf]
        %v325 = vld [vmem:[#allocation7 + $0x30] sm:$0xf]
        %v326 = vld [vmem:[#allocation7 + $0x34] sm:$0xf]
        %v327 = vld [vmem:[#allocation7 + $0x38] sm:$0xf]
        %v328 = vld [vmem:[#allocation7 + $0x3c] sm:$0xf]
        %v329 = vld [vmem:[#allocation7 + $0x40] sm:$0xf]
        %v330 = vld [vmem:[#allocation7 + $0x44] sm:$0xf]
        %v331 = vld [vmem:[#allocation7 + $0x48] sm:$0xf]
        %v332 = vld [vmem:[#allocation7 + $0x4c] sm:$0xf]
        %v333 = vld [vmem:[#allocation7 + $0x50] sm:$0xf]
        %v334 = vld [vmem:[#allocation7 + $0x54] sm:$0xf]
        %v335 = vld [vmem:[#allocation7 + $0x58] sm:$0xf]
        %v336 = vld [vmem:[#allocation7 + $0x5c] sm:$0xf]
        %v337 = vld [vmem:[#allocation7 + $0x60] sm:$0xf]
        %v338 = vld [vmem:[#allocation7 + $0x64] sm:$0xf]
        %v339 = vld [vmem:[#allocation7 + $0x68] sm:$0xf]
        %v340 = vld [vmem:[#allocation7 + $0x6c] sm:$0xf]
        %v341 = vld [vmem:[#allocation7 + $0x70] sm:$0xf]
        %v342 = vld [vmem:[#allocation7 + $0x74] sm:$0xf]
        %v343 = vld [vmem:[#allocation7 + $0x78] sm:$0xf]
        %v344 = vld [vmem:[#allocation7 + $0x7c] sm:$0xf]
        %v345 = vld [vmem:[#allocation7 + $0x80] sm:$0xf]
        %v346 = vld [vmem:[#allocation7 + $0x84] sm:$0xf]
        %v347 = vld [vmem:[#allocation7 + $0x88] sm:$0xf]
        %v348 = vld [vmem:[#allocation7 + $0x8c] sm:$0xf]
        %v349 = vld [vmem:[#allocation7 + $0x90] sm:$0xf]
        %v350 = vld [vmem:[#allocation7 + $0x94] sm:$0xf]
        %v351 = vld [vmem:[#allocation7 + $0x98] sm:$0xf]
        %v352 = vld [vmem:[#allocation7 + $0x9c] sm:$0xf]
        %v353 = vld [vmem:[#allocation7 + $0xa0] sm:$0xf]
        %v354 = vld [vmem:[#allocation7 + $0xa4] sm:$0xf]
        %v355 = vld [vmem:[#allocation7 + $0xa8] sm:$0xf]
        %v356 = vld [vmem:[#allocation7 + $0xac] sm:$0xf]
        %v357 = vld [vmem:[#allocation7 + $0xb0] sm:$0xf]
        %v358 = vld [vmem:[#allocation7 + $0xb4] sm:$0xf]
        %v359 = vld [vmem:[#allocation7 + $0xb8] sm:$0xf]
        %v360 = vld [vmem:[#allocation7 + $0xbc] sm:$0xf]
        %v361 = vld [vmem:[#allocation8] sm:$0xff]
        %v362 = vld [vmem:[#allocation8 + $0x8] sm:$0xff]
        %v363 = vld [vmem:[#allocation8 + $0x10] sm:$0xff]
        %v364 = vld [vmem:[#allocation8 + $0x18] sm:$0xff]
        %v365 = vld [vmem:[#allocation8 + $0x20] sm:$0xff]
        %v366 = vld [vmem:[#allocation8 + $0x28] sm:$0xff]
        %v367 = vld [vmem:[#allocation8 + $0x30] sm:$0xff]
        %v368 = vld [vmem:[#allocation8 + $0x38] sm:$0xff]
        %v369 = vld [vmem:[#allocation8 + $0x40] sm:$0xff]
        %v370 = vld [vmem:[#allocation8 + $0x48] sm:$0xff]
        %v371 = vld [vmem:[#allocation8 + $0x50] sm:$0xff]
        %v372 = vld [vmem:[#allocation8 + $0x58] sm:$0xff]
        %v373 = vld [vmem:[#allocation8 + $0x60] sm:$0xff]
        %v374 = vld [vmem:[#allocation8 + $0x68] sm:$0xff]
        %v375 = vld [vmem:[#allocation8 + $0x70] sm:$0xff]
        %v376 = vld [vmem:[#allocation8 + $0x78] sm:$0xff]
        %v377 = vld [vmem:[#allocation8 + $0x80] sm:$0xff]
        %v378 = vld [vmem:[#allocation8 + $0x88] sm:$0xff]
        %v379 = vld [vmem:[#allocation8 + $0x90] sm:$0xff]
        %v380 = vld [vmem:[#allocation8 + $0x98] sm:$0xff]
        %v381 = vld [vmem:[#allocation8 + $0xa0] sm:$0xff]
        %v382 = vld [vmem:[#allocation8 + $0xa8] sm:$0xff]
        %v383 = vld [vmem:[#allocation8 + $0xb0] sm:$0xff]
        %v384 = vld [vmem:[#allocation8 + $0xb8] sm:$0xff]
        %v385 = vld [vmem:[#allocation8 + $0xc0] sm:$0xff]
        %v386 = vld [vmem:[#allocation8 + $0xc8] sm:$0xff]
        %v387 = vld [vmem:[#allocation8 + $0xd0] sm:$0xff]
        %v388 = vld [vmem:[#allocation8 + $0xd8] sm:$0xff]
        %v389 = vld [vmem:[#allocation8 + $0xe0] sm:$0xff]
        %v390 = vld [vmem:[#allocation8 + $0xe8] sm:$0xff]
        %v391 = vld [vmem:[#allocation8 + $0xf0] sm:$0xff]
        %v392 = vld [vmem:[#allocation8 + $0xf8] sm:$0xff]
        %v393 = vadd.f32 %v311, 0.0
        %v394 = vadd.f32 %v312, 0.0
        %v427 = vunpack.c.l.b16 %v329
        %v428 = vunpack.c.l.b16 %v330
        %v429 = vunpack.c.l.b16 %v331
        %v430 = vunpack.c.l.b16 %v332
        %v431 = vunpack.c.l.b16 %v333
        %v432 = vunpack.c.l.b16 %v334
        %v433 = vunpack.c.l.b16 %v335
        %v434 = vunpack.c.l.b16 %v336
        %v435 = vunpack.c.l.b16 %v337
        %v436 = vunpack.c.l.b16 %v338
        %v437 = vunpack.c.l.b16 %v339
        %v438 = vunpack.c.l.b16 %v340
        %v439 = vunpack.c.l.b16 %v341
        %v440 = vunpack.c.l.b16 %v342
        %v441 = vunpack.c.l.b16 %v343
        %v442 = vunpack.c.l.b16 %v344
        %v443 = vunpack.c.l.b16 %v345
        %v444 = vunpack.c.l.b16 %v346
        %v445 = vunpack.c.l.b16 %v347
        %v446 = vunpack.c.l.b16 %v348
        %v447 = vunpack.c.l.b16 %v349
        %v448 = vunpack.c.l.b16 %v350
        %v449 = vunpack.c.l.b16 %v351
        %v450 = vunpack.c.l.b16 %v352
        %v451 = vunpack.c.l.b16 %v353
        %v452 = vunpack.c.l.b16 %v354
        %v453 = vunpack.c.l.b16 %v355
        %v454 = vunpack.c.l.b16 %v356
        %v455 = vunpack.c.l.b16 %v357
        %v456 = vunpack.c.l.b16 %v358
        %v457 = vunpack.c.l.b16 %v359
        %v458 = vunpack.c.l.b16 %v360
        %v459 = vpack.c.b16 %v428, %v427
        %v460 = vpack.c.b16 %v430, %v429
        %v461 = vpack.c.b16 %v432, %v431
        %v462 = vpack.c.b16 %v434, %v433
        %v463 = vpack.c.b16 %v436, %v435
        %v464 = vpack.c.b16 %v438, %v437
        %v465 = vpack.c.b16 %v440, %v439
        %v466 = vpack.c.b16 %v442, %v441
        %v467 = vpack.c.b16 %v444, %v443
        %v468 = vpack.c.b16 %v446, %v445
        %v469 = vpack.c.b16 %v448, %v447
        %v470 = vpack.c.b16 %v450, %v449
        %v471 = vpack.c.b16 %v452, %v451
        %v472 = vpack.c.b16 %v454, %v453
        %v473 = vpack.c.b16 %v456, %v455
        %v474 = vpack.c.b16 %v458, %v457
        %491 = vmatpush.bf16.msra.mxu0 %v466
        %492 = vmatpush.bf16.msra.mxu0 %v465
        %493 = vmatpush.bf16.msra.mxu0 %v464
        %494 = vmatpush.bf16.msra.mxu0 %v463
        %495 = vmatpush.bf16.msra.mxu0 %v462
        %496 = vmatpush.bf16.msra.mxu0 %v461
        %497 = vmatpush.bf16.msra.mxu0 %v460
        %498 = vmatpush.bf16.msra.mxu0 %v459
        %499 = vmatmul.f32.gmra.mxu0 %v393
        %v500 = vpop.f32.mrf.mxu0
        %v501 = vadd.f32 0.0, %v500
        %502 = vdwg.mxu0
        %503 = vmatpush.bf16.msra.mxu0 %v474
        %504 = vmatpush.bf16.msra.mxu0 %v473
        %505 = vmatpush.bf16.msra.mxu0 %v472
        %506 = vmatpush.bf16.msra.mxu0 %v471
        %507 = vmatpush.bf16.msra.mxu0 %v470
        %508 = vmatpush.bf16.msra.mxu0 %v469
        %509 = vmatpush.bf16.msra.mxu0 %v468
        %510 = vmatpush.bf16.msra.mxu0 %v467
        %511 = vmatmul.f32.gmra.mxu0 %v394
        %v512 = vpop.f32.mrf.mxu0
        %v513 = vadd.f32 %v501, %v512
        %514 = vdwg.mxu0
        %v531 = vunpack.c.l.b16 %v313
        %v532 = vunpack.c.l.b16 %v314
        %v533 = vunpack.c.l.b16 %v315
        %v534 = vunpack.c.l.b16 %v316
        %v535 = vunpack.c.l.b16 %v317
        %v536 = vunpack.c.l.b16 %v318
        %v537 = vunpack.c.l.b16 %v319
        %v538 = vunpack.c.l.b16 %v320
        %v539 = vunpack.c.l.b16 %v321
        %v540 = vunpack.c.l.b16 %v322
        %v541 = vunpack.c.l.b16 %v323
        %v542 = vunpack.c.l.b16 %v324
        %v543 = vunpack.c.l.b16 %v325
        %v544 = vunpack.c.l.b16 %v326
        %v545 = vunpack.c.l.b16 %v327
        %v546 = vunpack.c.l.b16 %v328
        %v547 = vpack.c.b16 %v532, %v531
        %v548 = vpack.c.b16 %v534, %v533
        %v549 = vpack.c.b16 %v536, %v535
        %v550 = vpack.c.b16 %v538, %v537
        %v551 = vpack.c.b16 %v540, %v539
        %v552 = vpack.c.b16 %v542, %v541
        %v553 = vpack.c.b16 %v544, %v543
        %v554 = vpack.c.b16 %v546, %v545
        %563 = vmatpush.bf16.msra.mxu0 %v554
        %564 = vmatpush.bf16.msra.mxu0 %v553
        %565 = vmatpush.bf16.msra.mxu0 %v552
        %566 = vmatpush.bf16.msra.mxu0 %v551
        %567 = vmatpush.bf16.msra.mxu0 %v550
        %568 = vmatpush.bf16.msra.mxu0 %v549
        %569 = vmatpush.bf16.msra.mxu0 %v548
        %570 = vmatpush.bf16.msra.mxu0 %v547
        %571 = vmatmul.f32.gmra.mxu0 %v290
        %v572 = vpop.f32.mrf.mxu0
        %v573 = vadd.f32 %v513, %v572
        %574 = vdwg.mxu0
        %v575 = vmax.f32 %v573, 0.0
        %v608 = vunpack.c.l.b16 %v361
        %v609 = vunpack.c.h.b16 %v361
        %v610 = vunpack.c.l.b16 %v362
        %v611 = vunpack.c.h.b16 %v362
        %v612 = vunpack.c.l.b16 %v363
        %v613 = vunpack.c.h.b16 %v363
        %v614 = vunpack.c.l.b16 %v364
        %v615 = vunpack.c.h.b16 %v364
        %v616 = vunpack.c.l.b16 %v365
        %v617 = vunpack.c.h.b16 %v365
        %v618 = vunpack.c.l.b16 %v366
        %v619 = vunpack.c.h.b16 %v366
        %v620 = vunpack.c.l.b16 %v367
        %v621 = vunpack.c.h.b16 %v367
        %v622 = vunpack.c.l.b16 %v368
        %v623 = vunpack.c.h.b16 %v368
        %v624 = vunpack.c.l.b16 %v369
        %v625 = vunpack.c.h.b16 %v369
        %v626 = vunpack.c.l.b16 %v370
        %v627 = vunpack.c.h.b16 %v370
        %v628 = vunpack.c.l.b16 %v371
        %v629 = vunpack.c.h.b16 %v371
        %v630 = vunpack.c.l.b16 %v372
        %v631 = vunpack.c.h.b16 %v372
        %v632 = vunpack.c.l.b16 %v373
        %v633 = vunpack.c.h.b16 %v373
        %v634 = vunpack.c.l.b16 %v374
        %v635 = vunpack.c.h.b16 %v374
        %v636 = vunpack.c.l.b16 %v375
        %v637 = vunpack.c.h.b16 %v375
        %v638 = vunpack.c.l.b16 %v376
        %v639 = vunpack.c.h.b16 %v376
        %v640 = vunpack.c.l.b16 %v377
        %v641 = vunpack.c.h.b16 %v377
        %v642 = vunpack.c.l.b16 %v378
        %v643 = vunpack.c.h.b16 %v378
        %v644 = vunpack.c.l.b16 %v379
        %v645 = vunpack.c.h.b16 %v379
        %v646 = vunpack.c.l.b16 %v380
        %v647 = vunpack.c.h.b16 %v380
        %v648 = vunpack.c.l.b16 %v381
        %v649 = vunpack.c.h.b16 %v381
        %v650 = vunpack.c.l.b16 %v382
        %v651 = vunpack.c.h.b16 %v382
        %v652 = vunpack.c.l.b16 %v383
        %v653 = vunpack.c.h.b16 %v383
        %v654 = vunpack.c.l.b16 %v384
        %v655 = vunpack.c.h.b16 %v384
        %v656 = vunpack.c.l.b16 %v385
        %v657 = vunpack.c.h.b16 %v385
        %v658 = vunpack.c.l.b16 %v386
        %v659 = vunpack.c.h.b16 %v386
        %v660 = vunpack.c.l.b16 %v387
        %v661 = vunpack.c.h.b16 %v387
        %v662 = vunpack.c.l.b16 %v388
        %v663 = vunpack.c.h.b16 %v388
        %v664 = vunpack.c.l.b16 %v389
        %v665 = vunpack.c.h.b16 %v389
        %v666 = vunpack.c.l.b16 %v390
        %v667 = vunpack.c.h.b16 %v390
        %v668 = vunpack.c.l.b16 %v391
        %v669 = vunpack.c.h.b16 %v391
        %v670 = vunpack.c.l.b16 %v392
        %v671 = vunpack.c.h.b16 %v392
        %v672 = vpack.c.b16 %v612, %v608
        %v673 = vpack.c.b16 %v613, %v609
        %v674 = vpack.c.b16 %v614, %v610
        %v675 = vpack.c.b16 %v615, %v611
        %v676 = vpack.c.b16 %v620, %v616
        %v677 = vpack.c.b16 %v621, %v617
        %v678 = vpack.c.b16 %v622, %v618
        %v679 = vpack.c.b16 %v623, %v619
        %v680 = vpack.c.b16 %v628, %v624
        %v681 = vpack.c.b16 %v629, %v625
        %v682 = vpack.c.b16 %v630, %v626
        %v683 = vpack.c.b16 %v631, %v627
        %v684 = vpack.c.b16 %v636, %v632
        %v685 = vpack.c.b16 %v637, %v633
        %v686 = vpack.c.b16 %v638, %v634
        %v687 = vpack.c.b16 %v639, %v635
        %v688 = vpack.c.b16 %v644, %v640
        %v689 = vpack.c.b16 %v645, %v641
        %v690 = vpack.c.b16 %v646, %v642
        %v691 = vpack.c.b16 %v647, %v643
        %v692 = vpack.c.b16 %v652, %v648
        %v693 = vpack.c.b16 %v653, %v649
        %v694 = vpack.c.b16 %v654, %v650
        %v695 = vpack.c.b16 %v655, %v651
        %v696 = vpack.c.b16 %v660, %v656
        %v697 = vpack.c.b16 %v661, %v657
        %v698 = vpack.c.b16 %v662, %v658
        %v699 = vpack.c.b16 %v663, %v659
        %v700 = vpack.c.b16 %v668, %v664
        %v701 = vpack.c.b16 %v669, %v665
        %v702 = vpack.c.b16 %v670, %v666
        %v703 = vpack.c.b16 %v671, %v667
        %736 = vmatpush.bf16.msra.mxu0 %v700
        %737 = vmatpush.bf16.msra.mxu0 %v696
        %738 = vmatpush.bf16.msra.mxu0 %v692
        %739 = vmatpush.bf16.msra.mxu0 %v688
        %740 = vmatpush.bf16.msra.mxu0 %v684
        %741 = vmatpush.bf16.msra.mxu0 %v680
        %742 = vmatpush.bf16.msra.mxu0 %v676
        %743 = vmatpush.bf16.msra.mxu0 %v672
        %744 = vmatmul.f32.gmra.mxu0 %v575
        %v745 = vpop.f32.mrf.mxu0
        %v746 = vadd.f32 0.0, %v745
        %747 = vdwg.mxu0
        %748 = vmatpush.bf16.msra.mxu0 %v701
        %749 = vmatpush.bf16.msra.mxu0 %v697
        %750 = vmatpush.bf16.msra.mxu0 %v693
        %751 = vmatpush.bf16.msra.mxu0 %v689
        %752 = vmatpush.bf16.msra.mxu0 %v685
        %753 = vmatpush.bf16.msra.mxu0 %v681
        %754 = vmatpush.bf16.msra.mxu0 %v677
        %755 = vmatpush.bf16.msra.mxu0 %v673
        %756 = vmatmul.f32.gmra.mxu0 %v575
        %v757 = vpop.f32.mrf.mxu0
        %v758 = vadd.f32 0.0, %v757
        %759 = vdwg.mxu0
        %760 = vmatpush.bf16.msra.mxu0 %v702
        %761 = vmatpush.bf16.msra.mxu0 %v698
        %762 = vmatpush.bf16.msra.mxu0 %v694
        %763 = vmatpush.bf16.msra.mxu0 %v690
        %764 = vmatpush.bf16.msra.mxu0 %v686
        %765 = vmatpush.bf16.msra.mxu0 %v682
        %766 = vmatpush.bf16.msra.mxu0 %v678
        %767 = vmatpush.bf16.msra.mxu0 %v674
        %768 = vmatmul.f32.gmra.mxu0 %v575
        %v769 = vpop.f32.mrf.mxu0
        %v770 = vadd.f32 0.0, %v769
        %771 = vdwg.mxu0
        %772 = vmatpush.bf16.msra.mxu0 %v703
        %773 = vmatpush.bf16.msra.mxu0 %v699
        %774 = vmatpush.bf16.msra.mxu0 %v695
        %775 = vmatpush.bf16.msra.mxu0 %v691
        %776 = vmatpush.bf16.msra.mxu0 %v687
        %777 = vmatpush.bf16.msra.mxu0 %v683
        %778 = vmatpush.bf16.msra.mxu0 %v679
        %779 = vmatpush.bf16.msra.mxu0 %v675
        %780 = vmatmul.f32.gmra.mxu0 %v575
        %v781 = vpop.f32.mrf.mxu0
        %v782 = vadd.f32 0.0, %v781
        %783 = vdwg.mxu0
        %v784 = vmul.f32 %v746, 0.0
        %v785 = vmul.f32 %v758, 0.0
        %v786 = vadd.f32 %v784, %v770
        %v787 = vadd.f32 %v785, %v782
        %v788 = vld [vmem:[#allocation7 + $0xc0] sm:$0xf]
        %v789 = vld [vmem:[#allocation7 + $0xc4] sm:$0xf]
        %v790 = vld [vmem:[#allocation7 + $0xc8] sm:$0xf]
        %v791 = vld [vmem:[#allocation7 + $0xcc] sm:$0xf]
        %v792 = vld [vmem:[#allocation7 + $0xd0] sm:$0xf]
        %v793 = vld [vmem:[#allocation7 + $0xd4] sm:$0xf]
        %v794 = vld [vmem:[#allocation7 + $0xd8] sm:$0xf]
        %v795 = vld [vmem:[#allocation7 + $0xdc] sm:$0xf]
        %v796 = vld [vmem:[#allocation7 + $0xe0] sm:$0xf]
        %v797 = vld [vmem:[#allocation7 + $0xe4] sm:$0xf]
        %v798 = vld [vmem:[#allocation7 + $0xe8] sm:$0xf]
        %v799 = vld [vmem:[#allocation7 + $0xec] sm:$0xf]
        %v800 = vld [vmem:[#allocation7 + $0xf0] sm:$0xf]
        %v801 = vld [vmem:[#allocation7 + $0xf4] sm:$0xf]
        %v802 = vld [vmem:[#allocation7 + $0xf8] sm:$0xf]
        %v803 = vld [vmem:[#allocation7 + $0xfc] sm:$0xf]
        %v804 = vld [vmem:[#allocation7 + $0x100] sm:$0xf]
        %v805 = vld [vmem:[#allocation7 + $0x104] sm:$0xf]
        %v806 = vld [vmem:[#allocation7 + $0x108] sm:$0xf]
        %v807 = vld [vmem:[#allocation7 + $0x10c] sm:$0xf]
        %v808 = vld [vmem:[#allocation7 + $0x110] sm:$0xf]
        %v809 = vld [vmem:[#allocation7 + $0x114] sm:$0xf]
        %v810 = vld [vmem:[#allocation7 + $0x118] sm:$0xf]
        %v811 = vld [vmem:[#allocation7 + $0x11c] sm:$0xf]
        %v812 = vld [vmem:[#allocation7 + $0x120] sm:$0xf]
        %v813 = vld [vmem:[#allocation7 + $0x124] sm:$0xf]
        %v814 = vld [vmem:[#allocation7 + $0x128] sm:$0xf]
        %v815 = vld [vmem:[#allocation7 + $0x12c] sm:$0xf]
        %v816 = vld [vmem:[#allocation7 + $0x130] sm:$0xf]
        %v817 = vld [vmem:[#allocation7 + $0x134] sm:$0xf]
        %v818 = vld [vmem:[#allocation7 + $0x138] sm:$0xf]
        %v819 = vld [vmem:[#allocation7 + $0x13c] sm:$0xf]
        %v820 = vld [vmem:[#allocation7 + $0x140] sm:$0xf]
        %v821 = vld [vmem:[#allocation7 + $0x144] sm:$0xf]
        %v822 = vld [vmem:[#allocation7 + $0x148] sm:$0xf]
        %v823 = vld [vmem:[#allocation7 + $0x14c] sm:$0xf]
        %v824 = vld [vmem:[#allocation7 + $0x150] sm:$0xf]
        %v825 = vld [vmem:[#allocation7 + $0x154] sm:$0xf]
        %v826 = vld [vmem:[#allocation7 + $0x158] sm:$0xf]
        %v827 = vld [vmem:[#allocation7 + $0x15c] sm:$0xf]
        %v828 = vld [vmem:[#allocation7 + $0x160] sm:$0xf]
        %v829 = vld [vmem:[#allocation7 + $0x164] sm:$0xf]
        %v830 = vld [vmem:[#allocation7 + $0x168] sm:$0xf]
        %v831 = vld [vmem:[#allocation7 + $0x16c] sm:$0xf]
        %v832 = vld [vmem:[#allocation7 + $0x170] sm:$0xf]
        %v833 = vld [vmem:[#allocation7 + $0x174] sm:$0xf]
        %v834 = vld [vmem:[#allocation7 + $0x178] sm:$0xf]
        %v835 = vld [vmem:[#allocation7 + $0x17c] sm:$0xf]
        %v836 = vld [vmem:[#allocation8 + $0x100] sm:$0xff]
        %v837 = vld [vmem:[#allocation8 + $0x108] sm:$0xff]
        %v838 = vld [vmem:[#allocation8 + $0x110] sm:$0xff]
        %v839 = vld [vmem:[#allocation8 + $0x118] sm:$0xff]
        %v840 = vld [vmem:[#allocation8 + $0x120] sm:$0xff]
        %v841 = vld [vmem:[#allocation8 + $0x128] sm:$0xff]
        %v842 = vld [vmem:[#allocation8 + $0x130] sm:$0xff]
        %v843 = vld [vmem:[#allocation8 + $0x138] sm:$0xff]
        %v844 = vld [vmem:[#allocation8 + $0x140] sm:$0xff]
        %v845 = vld [vmem:[#allocation8 + $0x148] sm:$0xff]
        %v846 = vld [vmem:[#allocation8 + $0x150] sm:$0xff]
        %v847 = vld [vmem:[#allocation8 + $0x158] sm:$0xff]
        %v848 = vld [vmem:[#allocation8 + $0x160] sm:$0xff]
        %v849 = vld [vmem:[#allocation8 + $0x168] sm:$0xff]
        %v850 = vld [vmem:[#allocation8 + $0x170] sm:$0xff]
        %v851 = vld [vmem:[#allocation8 + $0x178] sm:$0xff]
        %v852 = vld [vmem:[#allocation8 + $0x180] sm:$0xff]
        %v853 = vld [vmem:[#allocation8 + $0x188] sm:$0xff]
        %v854 = vld [vmem:[#allocation8 + $0x190] sm:$0xff]
        %v855 = vld [vmem:[#allocation8 + $0x198] sm:$0xff]
        %v856 = vld [vmem:[#allocation8 + $0x1a0] sm:$0xff]
        %v857 = vld [vmem:[#allocation8 + $0x1a8] sm:$0xff]
        %v858 = vld [vmem:[#allocation8 + $0x1b0] sm:$0xff]
        %v859 = vld [vmem:[#allocation8 + $0x1b8] sm:$0xff]
        %v860 = vld [vmem:[#allocation8 + $0x1c0] sm:$0xff]
        %v861 = vld [vmem:[#allocation8 + $0x1c8] sm:$0xff]
        %v862 = vld [vmem:[#allocation8 + $0x1d0] sm:$0xff]
        %v863 = vld [vmem:[#allocation8 + $0x1d8] sm:$0xff]
        %v864 = vld [vmem:[#allocation8 + $0x1e0] sm:$0xff]
        %v865 = vld [vmem:[#allocation8 + $0x1e8] sm:$0xff]
        %v866 = vld [vmem:[#allocation8 + $0x1f0] sm:$0xff]
        %v867 = vld [vmem:[#allocation8 + $0x1f8] sm:$0xff]
        %v868 = vmul.f32 %v746, %v311
        %v869 = vmul.f32 %v758, %v312
        %v870 = vadd.f32 %v868, %v786
        %v871 = vadd.f32 %v869, %v787
        %v904 = vunpack.c.l.b16 %v804
        %v905 = vunpack.c.l.b16 %v805
        %v906 = vunpack.c.l.b16 %v806
        %v907 = vunpack.c.l.b16 %v807
        %v908 = vunpack.c.l.b16 %v808
        %v909 = vunpack.c.l.b16 %v809
        %v910 = vunpack.c.l.b16 %v810
        %v911 = vunpack.c.l.b16 %v811
        %v912 = vunpack.c.l.b16 %v812
        %v913 = vunpack.c.l.b16 %v813
        %v914 = vunpack.c.l.b16 %v814
        %v915 = vunpack.c.l.b16 %v815
        %v916 = vunpack.c.l.b16 %v816
        %v917 = vunpack.c.l.b16 %v817
        %v918 = vunpack.c.l.b16 %v818
        %v919 = vunpack.c.l.b16 %v819
        %v920 = vunpack.c.l.b16 %v820
        %v921 = vunpack.c.l.b16 %v821
        %v922 = vunpack.c.l.b16 %v822
        %v923 = vunpack.c.l.b16 %v823
        %v924 = vunpack.c.l.b16 %v824
        %v925 = vunpack.c.l.b16 %v825
        %v926 = vunpack.c.l.b16 %v826
        %v927 = vunpack.c.l.b16 %v827
        %v928 = vunpack.c.l.b16 %v828
        %v929 = vunpack.c.l.b16 %v829
        %v930 = vunpack.c.l.b16 %v830
        %v931 = vunpack.c.l.b16 %v831
        %v932 = vunpack.c.l.b16 %v832
        %v933 = vunpack.c.l.b16 %v833
        %v934 = vunpack.c.l.b16 %v834
        %v935 = vunpack.c.l.b16 %v835
        %v936 = vpack.c.b16 %v905, %v904
        %v937 = vpack.c.b16 %v907, %v906
        %v938 = vpack.c.b16 %v909, %v908
        %v939 = vpack.c.b16 %v911, %v910
        %v940 = vpack.c.b16 %v913, %v912
        %v941 = vpack.c.b16 %v915, %v914
        %v942 = vpack.c.b16 %v917, %v916
        %v943 = vpack.c.b16 %v919, %v918
        %v944 = vpack.c.b16 %v921, %v920
        %v945 = vpack.c.b16 %v923, %v922
        %v946 = vpack.c.b16 %v925, %v924
        %v947 = vpack.c.b16 %v927, %v926
        %v948 = vpack.c.b16 %v929, %v928
        %v949 = vpack.c.b16 %v931, %v930
        %v950 = vpack.c.b16 %v933, %v932
        %v951 = vpack.c.b16 %v935, %v934
        %968 = vmatpush.bf16.msra.mxu0 %v943
        %969 = vmatpush.bf16.msra.mxu0 %v942
        %970 = vmatpush.bf16.msra.mxu0 %v941
        %971 = vmatpush.bf16.msra.mxu0 %v940
        %972 = vmatpush.bf16.msra.mxu0 %v939
        %973 = vmatpush.bf16.msra.mxu0 %v938
        %974 = vmatpush.bf16.msra.mxu0 %v937
        %975 = vmatpush.bf16.msra.mxu0 %v936
        %976 = vmatmul.f32.gmra.mxu0 %v870
        %v977 = vpop.f32.mrf.mxu0
        %v978 = vadd.f32 0.0, %v977
        %979 = vdwg.mxu0
        %980 = vmatpush.bf16.msra.mxu0 %v951
        %981 = vmatpush.bf16.msra.mxu0 %v950
        %982 = vmatpush.bf16.msra.mxu0 %v949
        %983 = vmatpush.bf16.msra.mxu0 %v948
        %984 = vmatpush.bf16.msra.mxu0 %v947
        %985 = vmatpush.bf16.msra.mxu0 %v946
        %986 = vmatpush.bf16.msra.mxu0 %v945
        %987 = vmatpush.bf16.msra.mxu0 %v944
        %988 = vmatmul.f32.gmra.mxu0 %v871
        %v989 = vpop.f32.mrf.mxu0
        %v990 = vadd.f32 %v978, %v989
        %991 = vdwg.mxu0
        %v993 = vperm.slane %v290, 1
        %v1011 = vunpack.c.l.b16 %v788
        %v1012 = vunpack.c.l.b16 %v789
        %v1013 = vunpack.c.l.b16 %v790
        %v1014 = vunpack.c.l.b16 %v791
        %v1015 = vunpack.c.l.b16 %v792
        %v1016 = vunpack.c.l.b16 %v793
        %v1017 = vunpack.c.l.b16 %v794
        %v1018 = vunpack.c.l.b16 %v795
        %v1019 = vunpack.c.l.b16 %v796
        %v1020 = vunpack.c.l.b16 %v797
        %v1021 = vunpack.c.l.b16 %v798
        %v1022 = vunpack.c.l.b16 %v799
        %v1023 = vunpack.c.l.b16 %v800
        %v1024 = vunpack.c.l.b16 %v801
        %v1025 = vunpack.c.l.b16 %v802
        %v1026 = vunpack.c.l.b16 %v803
        %v1027 = vpack.c.b16 %v1012, %v1011
        %v1028 = vpack.c.b16 %v1014, %v1013
        %v1029 = vpack.c.b16 %v1016, %v1015
        %v1030 = vpack.c.b16 %v1018, %v1017
        %v1031 = vpack.c.b16 %v1020, %v1019
        %v1032 = vpack.c.b16 %v1022, %v1021
        %v1033 = vpack.c.b16 %v1024, %v1023
        %v1034 = vpack.c.b16 %v1026, %v1025
        %1043 = vmatpush.bf16.msra.mxu0 %v1034
        %1044 = vmatpush.bf16.msra.mxu0 %v1033
        %1045 = vmatpush.bf16.msra.mxu0 %v1032
        %1046 = vmatpush.bf16.msra.mxu0 %v1031
        %1047 = vmatpush.bf16.msra.mxu0 %v1030
        %1048 = vmatpush.bf16.msra.mxu0 %v1029
        %1049 = vmatpush.bf16.msra.mxu0 %v1028
        %1050 = vmatpush.bf16.msra.mxu0 %v1027
        %1051 = vmatmul.f32.gmra.mxu0 %v993
        %v1052 = vpop.f32.mrf.mxu0
        %v1053 = vadd.f32 %v990, %v1052
        %1054 = vdwg.mxu0
        %v1055 = vmax.f32 %v1053, 0.0
        %v1088 = vunpack.c.l.b16 %v836
        %v1089 = vunpack.c.h.b16 %v836
        %v1090 = vunpack.c.l.b16 %v837
        %v1091 = vunpack.c.h.b16 %v837
        %v1092 = vunpack.c.l.b16 %v838
        %v1093 = vunpack.c.h.b16 %v838
        %v1094 = vunpack.c.l.b16 %v839
        %v1095 = vunpack.c.h.b16 %v839
        %v1096 = vunpack.c.l.b16 %v840
        %v1097 = vunpack.c.h.b16 %v840
        %v1098 = vunpack.c.l.b16 %v841
        %v1099 = vunpack.c.h.b16 %v841
        %v1100 = vunpack.c.l.b16 %v842
        %v1101 = vunpack.c.h.b16 %v842
        %v1102 = vunpack.c.l.b16 %v843
        %v1103 = vunpack.c.h.b16 %v843
        %v1104 = vunpack.c.l.b16 %v844
        %v1105 = vunpack.c.h.b16 %v844
        %v1106 = vunpack.c.l.b16 %v845
        %v1107 = vunpack.c.h.b16 %v845
        %v1108 = vunpack.c.l.b16 %v846
        %v1109 = vunpack.c.h.b16 %v846
        %v1110 = vunpack.c.l.b16 %v847
        %v1111 = vunpack.c.h.b16 %v847
        %v1112 = vunpack.c.l.b16 %v848
        %v1113 = vunpack.c.h.b16 %v848
        %v1114 = vunpack.c.l.b16 %v849
        %v1115 = vunpack.c.h.b16 %v849
        %v1116 = vunpack.c.l.b16 %v850
        %v1117 = vunpack.c.h.b16 %v850
        %v1118 = vunpack.c.l.b16 %v851
        %v1119 = vunpack.c.h.b16 %v851
        %v1120 = vunpack.c.l.b16 %v852
        %v1121 = vunpack.c.h.b16 %v852
        %v1122 = vunpack.c.l.b16 %v853
        %v1123 = vunpack.c.h.b16 %v853
        %v1124 = vunpack.c.l.b16 %v854
        %v1125 = vunpack.c.h.b16 %v854
        %v1126 = vunpack.c.l.b16 %v855
        %v1127 = vunpack.c.h.b16 %v855
        %v1128 = vunpack.c.l.b16 %v856
        %v1129 = vunpack.c.h.b16 %v856
        %v1130 = vunpack.c.l.b16 %v857
        %v1131 = vunpack.c.h.b16 %v857
        %v1132 = vunpack.c.l.b16 %v858
        %v1133 = vunpack.c.h.b16 %v858
        %v1134 = vunpack.c.l.b16 %v859
        %v1135 = vunpack.c.h.b16 %v859
        %v1136 = vunpack.c.l.b16 %v860
        %v1137 = vunpack.c.h.b16 %v860
        %v1138 = vunpack.c.l.b16 %v861
        %v1139 = vunpack.c.h.b16 %v861
        %v1140 = vunpack.c.l.b16 %v862
        %v1141 = vunpack.c.h.b16 %v862
        %v1142 = vunpack.c.l.b16 %v863
        %v1143 = vunpack.c.h.b16 %v863
        %v1144 = vunpack.c.l.b16 %v864
        %v1145 = vunpack.c.h.b16 %v864
        %v1146 = vunpack.c.l.b16 %v865
        %v1147 = vunpack.c.h.b16 %v865
        %v1148 = vunpack.c.l.b16 %v866
        %v1149 = vunpack.c.h.b16 %v866
        %v1150 = vunpack.c.l.b16 %v867
        %v1151 = vunpack.c.h.b16 %v867
        %v1152 = vpack.c.b16 %v1092, %v1088
        %v1153 = vpack.c.b16 %v1093, %v1089
        %v1154 = vpack.c.b16 %v1094, %v1090
        %v1155 = vpack.c.b16 %v1095, %v1091
        %v1156 = vpack.c.b16 %v1100, %v1096
        %v1157 = vpack.c.b16 %v1101, %v1097
        %v1158 = vpack.c.b16 %v1102, %v1098
        %v1159 = vpack.c.b16 %v1103, %v1099
        %v1160 = vpack.c.b16 %v1108, %v1104
        %v1161 = vpack.c.b16 %v1109, %v1105
        %v1162 = vpack.c.b16 %v1110, %v1106
        %v1163 = vpack.c.b16 %v1111, %v1107
        %v1164 = vpack.c.b16 %v1116, %v1112
        %v1165 = vpack.c.b16 %v1117, %v1113
        %v1166 = vpack.c.b16 %v1118, %v1114
        %v1167 = vpack.c.b16 %v1119, %v1115
        %v1168 = vpack.c.b16 %v1124, %v1120
        %v1169 = vpack.c.b16 %v1125, %v1121
        %v1170 = vpack.c.b16 %v1126, %v1122
        %v1171 = vpack.c.b16 %v1127, %v1123
        %v1172 = vpack.c.b16 %v1132, %v1128
        %v1173 = vpack.c.b16 %v1133, %v1129
        %v1174 = vpack.c.b16 %v1134, %v1130
        %v1175 = vpack.c.b16 %v1135, %v1131
        %v1176 = vpack.c.b16 %v1140, %v1136
        %v1177 = vpack.c.b16 %v1141, %v1137
        %v1178 = vpack.c.b16 %v1142, %v1138
        %v1179 = vpack.c.b16 %v1143, %v1139
        %v1180 = vpack.c.b16 %v1148, %v1144
        %v1181 = vpack.c.b16 %v1149, %v1145
        %v1182 = vpack.c.b16 %v1150, %v1146
        %v1183 = vpack.c.b16 %v1151, %v1147
        %1216 = vmatpush.bf16.msra.mxu0 %v1180
        %1217 = vmatpush.bf16.msra.mxu0 %v1176
        %1218 = vmatpush.bf16.msra.mxu0 %v1172
        %1219 = vmatpush.bf16.msra.mxu0 %v1168
        %1220 = vmatpush.bf16.msra.mxu0 %v1164
        %1221 = vmatpush.bf16.msra.mxu0 %v1160
        %1222 = vmatpush.bf16.msra.mxu0 %v1156
        %1223 = vmatpush.bf16.msra.mxu0 %v1152
        %1224 = vmatmul.f32.gmra.mxu0 %v1055
        %v1225 = vpop.f32.mrf.mxu0
        %v1226 = vadd.f32 0.0, %v1225
        %1227 = vdwg.mxu0
        %1228 = vmatpush.bf16.msra.mxu0 %v1181
        %1229 = vmatpush.bf16.msra.mxu0 %v1177
        %1230 = vmatpush.bf16.msra.mxu0 %v1173
        %1231 = vmatpush.bf16.msra.mxu0 %v1169
        %1232 = vmatpush.bf16.msra.mxu0 %v1165
        %1233 = vmatpush.bf16.msra.mxu0 %v1161
        %1234 = vmatpush.bf16.msra.mxu0 %v1157
        %1235 = vmatpush.bf16.msra.mxu0 %v1153
        %1236 = vmatmul.f32.gmra.mxu0 %v1055
        %v1237 = vpop.f32.mrf.mxu0
        %v1238 = vadd.f32 0.0, %v1237
        %1239 = vdwg.mxu0
        %1240 = vmatpush.bf16.msra.mxu0 %v1182
        %1241 = vmatpush.bf16.msra.mxu0 %v1178
        %1242 = vmatpush.bf16.msra.mxu0 %v1174
        %1243 = vmatpush.bf16.msra.mxu0 %v1170
        %1244 = vmatpush.bf16.msra.mxu0 %v1166
        %1245 = vmatpush.bf16.msra.mxu0 %v1162
        %1246 = vmatpush.bf16.msra.mxu0 %v1158
        %1247 = vmatpush.bf16.msra.mxu0 %v1154
        %1248 = vmatmul.f32.gmra.mxu0 %v1055
        %v1249 = vpop.f32.mrf.mxu0
        %v1250 = vadd.f32 0.0, %v1249
        %1251 = vdwg.mxu0
        %1252 = vmatpush.bf16.msra.mxu0 %v1183
        %1253 = vmatpush.bf16.msra.mxu0 %v1179
        %1254 = vmatpush.bf16.msra.mxu0 %v1175
        %1255 = vmatpush.bf16.msra.mxu0 %v1171
        %1256 = vmatpush.bf16.msra.mxu0 %v1167
        %1257 = vmatpush.bf16.msra.mxu0 %v1163
        %1258 = vmatpush.bf16.msra.mxu0 %v1159
        %1259 = vmatpush.bf16.msra.mxu0 %v1155
        %1260 = vmatmul.f32.gmra.mxu0 %v1055
        %v1261 = vpop.f32.mrf.mxu0
        %v1262 = vadd.f32 0.0, %v1261
        %1263 = vdwg.mxu0
        %v1264 = vmul.f32 %v1226, %v746
        %v1265 = vmul.f32 %v1238, %v758
        %v1266 = vmul.f32 %v1226, %v786
        %v1267 = vmul.f32 %v1238, %v787
        %v1268 = vadd.f32 %v1266, %v1250
        %v1269 = vadd.f32 %v1267, %v1262
        %v1270 = vld [vmem:[#allocation7 + $0x180] sm:$0xf]
        %v1271 = vld [vmem:[#allocation7 + $0x184] sm:$0xf]
        %v1272 = vld [vmem:[#allocation7 + $0x188] sm:$0xf]
        %v1273 = vld [vmem:[#allocation7 + $0x18c] sm:$0xf]
        %v1274 = vld [vmem:[#allocation7 + $0x190] sm:$0xf]
        %v1275 = vld [vmem:[#allocation7 + $0x194] sm:$0xf]
        %v1276 = vld [vmem:[#allocation7 + $0x198] sm:$0xf]
        %v1277 = vld [vmem:[#allocation7 + $0x19c] sm:$0xf]
        %v1278 = vld [vmem:[#allocation7 + $0x1a0] sm:$0xf]
        %v1279 = vld [vmem:[#allocation7 + $0x1a4] sm:$0xf]
        %v1280 = vld [vmem:[#allocation7 + $0x1a8] sm:$0xf]
        %v1281 = vld [vmem:[#allocation7 + $0x1ac] sm:$0xf]
        %v1282 = vld [vmem:[#allocation7 + $0x1b0] sm:$0xf]
        %v1283 = vld [vmem:[#allocation7 + $0x1b4] sm:$0xf]
        %v1284 = vld [vmem:[#allocation7 + $0x1b8] sm:$0xf]
        %v1285 = vld [vmem:[#allocation7 + $0x1bc] sm:$0xf]
        %v1286 = vld [vmem:[#allocation7 + $0x1c0] sm:$0xf]
        %v1287 = vld [vmem:[#allocation7 + $0x1c4] sm:$0xf]
        %v1288 = vld [vmem:[#allocation7 + $0x1c8] sm:$0xf]
        %v1289 = vld [vmem:[#allocation7 + $0x1cc] sm:$0xf]
        %v1290 = vld [vmem:[#allocation7 + $0x1d0] sm:$0xf]
        %v1291 = vld [vmem:[#allocation7 + $0x1d4] sm:$0xf]
        %v1292 = vld [vmem:[#allocation7 + $0x1d8] sm:$0xf]
        %v1293 = vld [vmem:[#allocation7 + $0x1dc] sm:$0xf]
        %v1294 = vld [vmem:[#allocation7 + $0x1e0] sm:$0xf]
        %v1295 = vld [vmem:[#allocation7 + $0x1e4] sm:$0xf]
        %v1296 = vld [vmem:[#allocation7 + $0x1e8] sm:$0xf]
        %v1297 = vld [vmem:[#allocation7 + $0x1ec] sm:$0xf]
        %v1298 = vld [vmem:[#allocation7 + $0x1f0] sm:$0xf]
        %v1299 = vld [vmem:[#allocation7 + $0x1f4] sm:$0xf]
        %v1300 = vld [vmem:[#allocation7 + $0x1f8] sm:$0xf]
        %v1301 = vld [vmem:[#allocation7 + $0x1fc] sm:$0xf]
        %v1302 = vld [vmem:[#allocation7 + $0x200] sm:$0xf]
        %v1303 = vld [vmem:[#allocation7 + $0x204] sm:$0xf]
        %v1304 = vld [vmem:[#allocation7 + $0x208] sm:$0xf]
        %v1305 = vld [vmem:[#allocation7 + $0x20c] sm:$0xf]
        %v1306 = vld [vmem:[#allocation7 + $0x210] sm:$0xf]
        %v1307 = vld [vmem:[#allocation7 + $0x214] sm:$0xf]
        %v1308 = vld [vmem:[#allocation7 + $0x218] sm:$0xf]
        %v1309 = vld [vmem:[#allocation7 + $0x21c] sm:$0xf]
        %v1310 = vld [vmem:[#allocation7 + $0x220] sm:$0xf]
        %v1311 = vld [vmem:[#allocation7 + $0x224] sm:$0xf]
        %v1312 = vld [vmem:[#allocation7 + $0x228] sm:$0xf]
        %v1313 = vld [vmem:[#allocation7 + $0x22c] sm:$0xf]
        %v1314 = vld [vmem:[#allocation7 + $0x230] sm:$0xf]
        %v1315 = vld [vmem:[#allocation7 + $0x234] sm:$0xf]
        %v1316 = vld [vmem:[#allocation7 + $0x238] sm:$0xf]
        %v1317 = vld [vmem:[#allocation7 + $0x23c] sm:$0xf]
        %v1318 = vld [vmem:[#allocation8 + $0x200] sm:$0xff]
        %v1319 = vld [vmem:[#allocation8 + $0x208] sm:$0xff]
        %v1320 = vld [vmem:[#allocation8 + $0x210] sm:$0xff]
        %v1321 = vld [vmem:[#allocation8 + $0x218] sm:$0xff]
        %v1322 = vld [vmem:[#allocation8 + $0x220] sm:$0xff]
        %v1323 = vld [vmem:[#allocation8 + $0x228] sm:$0xff]
        %v1324 = vld [vmem:[#allocation8 + $0x230] sm:$0xff]
        %v1325 = vld [vmem:[#allocation8 + $0x238] sm:$0xff]
        %v1326 = vld [vmem:[#allocation8 + $0x240] sm:$0xff]
        %v1327 = vld [vmem:[#allocation8 + $0x248] sm:$0xff]
        %v1328 = vld [vmem:[#allocation8 + $0x250] sm:$0xff]
        %v1329 = vld [vmem:[#allocation8 + $0x258] sm:$0xff]
        %v1330 = vld [vmem:[#allocation8 + $0x260] sm:$0xff]
        %v1331 = vld [vmem:[#allocation8 + $0x268] sm:$0xff]
        %v1332 = vld [vmem:[#allocation8 + $0x270] sm:$0xff]
        %v1333 = vld [vmem:[#allocation8 + $0x278] sm:$0xff]
        %v1334 = vld [vmem:[#allocation8 + $0x280] sm:$0xff]
        %v1335 = vld [vmem:[#allocation8 + $0x288] sm:$0xff]
        %v1336 = vld [vmem:[#allocation8 + $0x290] sm:$0xff]
        %v1337 = vld [vmem:[#allocation8 + $0x298] sm:$0xff]
        %v1338 = vld [vmem:[#allocation8 + $0x2a0] sm:$0xff]
        %v1339 = vld [vmem:[#allocation8 + $0x2a8] sm:$0xff]
        %v1340 = vld [vmem:[#allocation8 + $0x2b0] sm:$0xff]
        %v1341 = vld [vmem:[#allocation8 + $0x2b8] sm:$0xff]
        %v1342 = vld [vmem:[#allocation8 + $0x2c0] sm:$0xff]
        %v1343 = vld [vmem:[#allocation8 + $0x2c8] sm:$0xff]
        %v1344 = vld [vmem:[#allocation8 + $0x2d0] sm:$0xff]
        %v1345 = vld [vmem:[#allocation8 + $0x2d8] sm:$0xff]
        %v1346 = vld [vmem:[#allocation8 + $0x2e0] sm:$0xff]
        %v1347 = vld [vmem:[#allocation8 + $0x2e8] sm:$0xff]
        %v1348 = vld [vmem:[#allocation8 + $0x2f0] sm:$0xff]
        %v1349 = vld [vmem:[#allocation8 + $0x2f8] sm:$0xff]
        %v1350 = vmul.f32 %v1264, %v311
        %v1351 = vmul.f32 %v1265, %v312
        %v1352 = vadd.f32 %v1350, %v1268
        %v1353 = vadd.f32 %v1351, %v1269
        %v1386 = vunpack.c.l.b16 %v1286
        %v1387 = vunpack.c.l.b16 %v1287
        %v1388 = vunpack.c.l.b16 %v1288
        %v1389 = vunpack.c.l.b16 %v1289
        %v1390 = vunpack.c.l.b16 %v1290
        %v1391 = vunpack.c.l.b16 %v1291
        %v1392 = vunpack.c.l.b16 %v1292
        %v1393 = vunpack.c.l.b16 %v1293
        %v1394 = vunpack.c.l.b16 %v1294
        %v1395 = vunpack.c.l.b16 %v1295
        %v1396 = vunpack.c.l.b16 %v1296
        %v1397 = vunpack.c.l.b16 %v1297
        %v1398 = vunpack.c.l.b16 %v1298
        %v1399 = vunpack.c.l.b16 %v1299
        %v1400 = vunpack.c.l.b16 %v1300
        %v1401 = vunpack.c.l.b16 %v1301
        %v1402 = vunpack.c.l.b16 %v1302
        %v1403 = vunpack.c.l.b16 %v1303
        %v1404 = vunpack.c.l.b16 %v1304
        %v1405 = vunpack.c.l.b16 %v1305
        %v1406 = vunpack.c.l.b16 %v1306
        %v1407 = vunpack.c.l.b16 %v1307
        %v1408 = vunpack.c.l.b16 %v1308
        %v1409 = vunpack.c.l.b16 %v1309
        %v1410 = vunpack.c.l.b16 %v1310
        %v1411 = vunpack.c.l.b16 %v1311
        %v1412 = vunpack.c.l.b16 %v1312
        %v1413 = vunpack.c.l.b16 %v1313
        %v1414 = vunpack.c.l.b16 %v1314
        %v1415 = vunpack.c.l.b16 %v1315
        %v1416 = vunpack.c.l.b16 %v1316
        %v1417 = vunpack.c.l.b16 %v1317
        %v1418 = vpack.c.b16 %v1387, %v1386
        %v1419 = vpack.c.b16 %v1389, %v1388
        %v1420 = vpack.c.b16 %v1391, %v1390
        %v1421 = vpack.c.b16 %v1393, %v1392
        %v1422 = vpack.c.b16 %v1395, %v1394
        %v1423 = vpack.c.b16 %v1397, %v1396
        %v1424 = vpack.c.b16 %v1399, %v1398
        %v1425 = vpack.c.b16 %v1401, %v1400
        %v1426 = vpack.c.b16 %v1403, %v1402
        %v1427 = vpack.c.b16 %v1405, %v1404
        %v1428 = vpack.c.b16 %v1407, %v1406
        %v1429 = vpack.c.b16 %v1409, %v1408
        %v1430 = vpack.c.b16 %v1411, %v1410
        %v1431 = vpack.c.b16 %v1413, %v1412
        %v1432 = vpack.c.b16 %v1415, %v1414
        %v1433 = vpack.c.b16 %v1417, %v1416
        %1450 = vmatpush.bf16.msra.mxu0 %v1425
        %1451 = vmatpush.bf16.msra.mxu0 %v1424
        %1452 = vmatpush.bf16.msra.mxu0 %v1423
        %1453 = vmatpush.bf16.msra.mxu0 %v1422
        %1454 = vmatpush.bf16.msra.mxu0 %v1421
        %1455 = vmatpush.bf16.msra.mxu0 %v1420
        %1456 = vmatpush.bf16.msra.mxu0 %v1419
        %1457 = vmatpush.bf16.msra.mxu0 %v1418
        %1458 = vmatmul.f32.gmra.mxu0 %v1352
        %v1459 = vpop.f32.mrf.mxu0
        %v1460 = vadd.f32 0.0, %v1459
        %1461 = vdwg.mxu0
        %1462 = vmatpush.bf16.msra.mxu0 %v1433
        %1463 = vmatpush.bf16.msra.mxu0 %v1432
        %1464 = vmatpush.bf16.msra.mxu0 %v1431
        %1465 = vmatpush.bf16.msra.mxu0 %v1430
        %1466 = vmatpush.bf16.msra.mxu0 %v1429
        %1467 = vmatpush.bf16.msra.mxu0 %v1428
        %1468 = vmatpush.bf16.msra.mxu0 %v1427
        %1469 = vmatpush.bf16.msra.mxu0 %v1426
        %1470 = vmatmul.f32.gmra.mxu0 %v1353
        %v1471 = vpop.f32.mrf.mxu0
        %v1472 = vadd.f32 %v1460, %v1471
        %1473 = vdwg.mxu0
        %v1474 = vperm.slane %v290, 2
        %v1492 = vunpack.c.l.b16 %v1270
        %v1493 = vunpack.c.l.b16 %v1271
        %v1494 = vunpack.c.l.b16 %v1272
        %v1495 = vunpack.c.l.b16 %v1273
        %v1496 = vunpack.c.l.b16 %v1274
        %v1497 = vunpack.c.l.b16 %v1275
        %v1498 = vunpack.c.l.b16 %v1276
        %v1499 = vunpack.c.l.b16 %v1277
        %v1500 = vunpack.c.l.b16 %v1278
        %v1501 = vunpack.c.l.b16 %v1279
        %v1502 = vunpack.c.l.b16 %v1280
        %v1503 = vunpack.c.l.b16 %v1281
        %v1504 = vunpack.c.l.b16 %v1282
        %v1505 = vunpack.c.l.b16 %v1283
        %v1506 = vunpack.c.l.b16 %v1284
        %v1507 = vunpack.c.l.b16 %v1285
        %v1508 = vpack.c.b16 %v1493, %v1492
        %v1509 = vpack.c.b16 %v1495, %v1494
        %v1510 = vpack.c.b16 %v1497, %v1496
        %v1511 = vpack.c.b16 %v1499, %v1498
        %v1512 = vpack.c.b16 %v1501, %v1500
        %v1513 = vpack.c.b16 %v1503, %v1502
        %v1514 = vpack.c.b16 %v1505, %v1504
        %v1515 = vpack.c.b16 %v1507, %v1506
        %1524 = vmatpush.bf16.msra.mxu0 %v1515
        %1525 = vmatpush.bf16.msra.mxu0 %v1514
        %1526 = vmatpush.bf16.msra.mxu0 %v1513
        %1527 = vmatpush.bf16.msra.mxu0 %v1512
        %1528 = vmatpush.bf16.msra.mxu0 %v1511
        %1529 = vmatpush.bf16.msra.mxu0 %v1510
        %1530 = vmatpush.bf16.msra.mxu0 %v1509
        %1531 = vmatpush.bf16.msra.mxu0 %v1508
        %1532 = vmatmul.f32.gmra.mxu0 %v1474
        %v1533 = vpop.f32.mrf.mxu0
        %v1534 = vadd.f32 %v1472, %v1533
        %1535 = vdwg.mxu0
        %v1536 = vmax.f32 %v1534, 0.0
        %v1569 = vunpack.c.l.b16 %v1318
        %v1570 = vunpack.c.h.b16 %v1318
        %v1571 = vunpack.c.l.b16 %v1319
        %v1572 = vunpack.c.h.b16 %v1319
        %v1573 = vunpack.c.l.b16 %v1320
        %v1574 = vunpack.c.h.b16 %v1320
        %v1575 = vunpack.c.l.b16 %v1321
        %v1576 = vunpack.c.h.b16 %v1321
        %v1577 = vunpack.c.l.b16 %v1322
        %v1578 = vunpack.c.h.b16 %v1322
        %v1579 = vunpack.c.l.b16 %v1323
        %v1580 = vunpack.c.h.b16 %v1323
        %v1581 = vunpack.c.l.b16 %v1324
        %v1582 = vunpack.c.h.b16 %v1324
        %v1583 = vunpack.c.l.b16 %v1325
        %v1584 = vunpack.c.h.b16 %v1325
        %v1585 = vunpack.c.l.b16 %v1326
        %v1586 = vunpack.c.h.b16 %v1326
        %v1587 = vunpack.c.l.b16 %v1327
        %v1588 = vunpack.c.h.b16 %v1327
        %v1589 = vunpack.c.l.b16 %v1328
        %v1590 = vunpack.c.h.b16 %v1328
        %v1591 = vunpack.c.l.b16 %v1329
        %v1592 = vunpack.c.h.b16 %v1329
        %v1593 = vunpack.c.l.b16 %v1330
        %v1594 = vunpack.c.h.b16 %v1330
        %v1595 = vunpack.c.l.b16 %v1331
        %v1596 = vunpack.c.h.b16 %v1331
        %v1597 = vunpack.c.l.b16 %v1332
        %v1598 = vunpack.c.h.b16 %v1332
        %v1599 = vunpack.c.l.b16 %v1333
        %v1600 = vunpack.c.h.b16 %v1333
        %v1601 = vunpack.c.l.b16 %v1334
        %v1602 = vunpack.c.h.b16 %v1334
        %v1603 = vunpack.c.l.b16 %v1335
        %v1604 = vunpack.c.h.b16 %v1335
        %v1605 = vunpack.c.l.b16 %v1336
        %v1606 = vunpack.c.h.b16 %v1336
        %v1607 = vunpack.c.l.b16 %v1337
        %v1608 = vunpack.c.h.b16 %v1337
        %v1609 = vunpack.c.l.b16 %v1338
        %v1610 = vunpack.c.h.b16 %v1338
        %v1611 = vunpack.c.l.b16 %v1339
        %v1612 = vunpack.c.h.b16 %v1339
        %v1613 = vunpack.c.l.b16 %v1340
        %v1614 = vunpack.c.h.b16 %v1340
        %v1615 = vunpack.c.l.b16 %v1341
        %v1616 = vunpack.c.h.b16 %v1341
        %v1617 = vunpack.c.l.b16 %v1342
        %v1618 = vunpack.c.h.b16 %v1342
        %v1619 = vunpack.c.l.b16 %v1343
        %v1620 = vunpack.c.h.b16 %v1343
        %v1621 = vunpack.c.l.b16 %v1344
        %v1622 = vunpack.c.h.b16 %v1344
        %v1623 = vunpack.c.l.b16 %v1345
        %v1624 = vunpack.c.h.b16 %v1345
        %v1625 = vunpack.c.l.b16 %v1346
        %v1626 = vunpack.c.h.b16 %v1346
        %v1627 = vunpack.c.l.b16 %v1347
        %v1628 = vunpack.c.h.b16 %v1347
        %v1629 = vunpack.c.l.b16 %v1348
        %v1630 = vunpack.c.h.b16 %v1348
        %v1631 = vunpack.c.l.b16 %v1349
        %v1632 = vunpack.c.h.b16 %v1349
        %v1633 = vpack.c.b16 %v1573, %v1569
        %v1634 = vpack.c.b16 %v1574, %v1570
        %v1635 = vpack.c.b16 %v1575, %v1571
        %v1636 = vpack.c.b16 %v1576, %v1572
        %v1637 = vpack.c.b16 %v1581, %v1577
        %v1638 = vpack.c.b16 %v1582, %v1578
        %v1639 = vpack.c.b16 %v1583, %v1579
        %v1640 = vpack.c.b16 %v1584, %v1580
        %v1641 = vpack.c.b16 %v1589, %v1585
        %v1642 = vpack.c.b16 %v1590, %v1586
        %v1643 = vpack.c.b16 %v1591, %v1587
        %v1644 = vpack.c.b16 %v1592, %v1588
        %v1645 = vpack.c.b16 %v1597, %v1593
        %v1646 = vpack.c.b16 %v1598, %v1594
        %v1647 = vpack.c.b16 %v1599, %v1595
        %v1648 = vpack.c.b16 %v1600, %v1596
        %v1649 = vpack.c.b16 %v1605, %v1601
        %v1650 = vpack.c.b16 %v1606, %v1602
        %v1651 = vpack.c.b16 %v1607, %v1603
        %v1652 = vpack.c.b16 %v1608, %v1604
        %v1653 = vpack.c.b16 %v1613, %v1609
        %v1654 = vpack.c.b16 %v1614, %v1610
        %v1655 = vpack.c.b16 %v1615, %v1611
        %v1656 = vpack.c.b16 %v1616, %v1612
        %v1657 = vpack.c.b16 %v1621, %v1617
        %v1658 = vpack.c.b16 %v1622, %v1618
        %v1659 = vpack.c.b16 %v1623, %v1619
        %v1660 = vpack.c.b16 %v1624, %v1620
        %v1661 = vpack.c.b16 %v1629, %v1625
        %v1662 = vpack.c.b16 %v1630, %v1626
        %v1663 = vpack.c.b16 %v1631, %v1627
        %v1664 = vpack.c.b16 %v1632, %v1628
        %1697 = vmatpush.bf16.msra.mxu0 %v1661
        %1698 = vmatpush.bf16.msra.mxu0 %v1657
        %1699 = vmatpush.bf16.msra.mxu0 %v1653
        %1700 = vmatpush.bf16.msra.mxu0 %v1649
        %1701 = vmatpush.bf16.msra.mxu0 %v1645
        %1702 = vmatpush.bf16.msra.mxu0 %v1641
        %1703 = vmatpush.bf16.msra.mxu0 %v1637
        %1704 = vmatpush.bf16.msra.mxu0 %v1633
        %1705 = vmatmul.f32.gmra.mxu0 %v1536
        %v1706 = vpop.f32.mrf.mxu0
        %v1707 = vadd.f32 0.0, %v1706
        %1708 = vdwg.mxu0
        %1709 = vmatpush.bf16.msra.mxu0 %v1662
        %1710 = vmatpush.bf16.msra.mxu0 %v1658
        %1711 = vmatpush.bf16.msra.mxu0 %v1654
        %1712 = vmatpush.bf16.msra.mxu0 %v1650
        %1713 = vmatpush.bf16.msra.mxu0 %v1646
        %1714 = vmatpush.bf16.msra.mxu0 %v1642
        %1715 = vmatpush.bf16.msra.mxu0 %v1638
        %1716 = vmatpush.bf16.msra.mxu0 %v1634
        %1717 = vmatmul.f32.gmra.mxu0 %v1536
        %v1718 = vpop.f32.mrf.mxu0
        %v1719 = vadd.f32 0.0, %v1718
        %1720 = vdwg.mxu0
        %1721 = vmatpush.bf16.msra.mxu0 %v1663
        %1722 = vmatpush.bf16.msra.mxu0 %v1659
        %1723 = vmatpush.bf16.msra.mxu0 %v1655
        %1724 = vmatpush.bf16.msra.mxu0 %v1651
        %1725 = vmatpush.bf16.msra.mxu0 %v1647
        %1726 = vmatpush.bf16.msra.mxu0 %v1643
        %1727 = vmatpush.bf16.msra.mxu0 %v1639
        %1728 = vmatpush.bf16.msra.mxu0 %v1635
        %1729 = vmatmul.f32.gmra.mxu0 %v1536
        %v1730 = vpop.f32.mrf.mxu0
        %v1731 = vadd.f32 0.0, %v1730
        %1732 = vdwg.mxu0
        %1733 = vmatpush.bf16.msra.mxu0 %v1664
        %1734 = vmatpush.bf16.msra.mxu0 %v1660
        %1735 = vmatpush.bf16.msra.mxu0 %v1656
        %1736 = vmatpush.bf16.msra.mxu0 %v1652
        %1737 = vmatpush.bf16.msra.mxu0 %v1648
        %1738 = vmatpush.bf16.msra.mxu0 %v1644
        %1739 = vmatpush.bf16.msra.mxu0 %v1640
        %1740 = vmatpush.bf16.msra.mxu0 %v1636
        %1741 = vmatmul.f32.gmra.mxu0 %v1536
        %v1742 = vpop.f32.mrf.mxu0
        %v1743 = vadd.f32 0.0, %v1742
        %1744 = vdwg.mxu0
        %v1745 = vmul.f32 %v1707, %v1264
        %v1746 = vmul.f32 %v1719, %v1265
        %v1747 = vmul.f32 %v1707, %v1268
        %v1748 = vmul.f32 %v1719, %v1269
        %v1749 = vadd.f32 %v1747, %v1731
        %v1750 = vadd.f32 %v1748, %v1743
        %v1751 = vld [vmem:[#allocation7 + $0x240] sm:$0xf]
        %v1752 = vld [vmem:[#allocation7 + $0x244] sm:$0xf]
        %v1753 = vld [vmem:[#allocation7 + $0x248] sm:$0xf]
        %v1754 = vld [vmem:[#allocation7 + $0x24c] sm:$0xf]
        %v1755 = vld [vmem:[#allocation7 + $0x250] sm:$0xf]
        %v1756 = vld [vmem:[#allocation7 + $0x254] sm:$0xf]
        %v1757 = vld [vmem:[#allocation7 + $0x258] sm:$0xf]
        %v1758 = vld [vmem:[#allocation7 + $0x25c] sm:$0xf]
        %v1759 = vld [vmem:[#allocation7 + $0x260] sm:$0xf]
        %v1760 = vld [vmem:[#allocation7 + $0x264] sm:$0xf]
        %v1761 = vld [vmem:[#allocation7 + $0x268] sm:$0xf]
        %v1762 = vld [vmem:[#allocation7 + $0x26c] sm:$0xf]
        %v1763 = vld [vmem:[#allocation7 + $0x270] sm:$0xf]
        %v1764 = vld [vmem:[#allocation7 + $0x274] sm:$0xf]
        %v1765 = vld [vmem:[#allocation7 + $0x278] sm:$0xf]
        %v1766 = vld [vmem:[#allocation7 + $0x27c] sm:$0xf]
        %v1767 = vld [vmem:[#allocation7 + $0x280] sm:$0xf]
        %v1768 = vld [vmem:[#allocation7 + $0x284] sm:$0xf]
        %v1769 = vld [vmem:[#allocation7 + $0x288] sm:$0xf]
        %v1770 = vld [vmem:[#allocation7 + $0x28c] sm:$0xf]
        %v1771 = vld [vmem:[#allocation7 + $0x290] sm:$0xf]
        %v1772 = vld [vmem:[#allocation7 + $0x294] sm:$0xf]
        %v1773 = vld [vmem:[#allocation7 + $0x298] sm:$0xf]
        %v1774 = vld [vmem:[#allocation7 + $0x29c] sm:$0xf]
        %v1775 = vld [vmem:[#allocation7 + $0x2a0] sm:$0xf]
        %v1776 = vld [vmem:[#allocation7 + $0x2a4] sm:$0xf]
        %v1777 = vld [vmem:[#allocation7 + $0x2a8] sm:$0xf]
        %v1778 = vld [vmem:[#allocation7 + $0x2ac] sm:$0xf]
        %v1779 = vld [vmem:[#allocation7 + $0x2b0] sm:$0xf]
        %v1780 = vld [vmem:[#allocation7 + $0x2b4] sm:$0xf]
        %v1781 = vld [vmem:[#allocation7 + $0x2b8] sm:$0xf]
        %v1782 = vld [vmem:[#allocation7 + $0x2bc] sm:$0xf]
        %v1783 = vld [vmem:[#allocation7 + $0x2c0] sm:$0xf]
        %v1784 = vld [vmem:[#allocation7 + $0x2c4] sm:$0xf]
        %v1785 = vld [vmem:[#allocation7 + $0x2c8] sm:$0xf]
        %v1786 = vld [vmem:[#allocation7 + $0x2cc] sm:$0xf]
        %v1787 = vld [vmem:[#allocation7 + $0x2d0] sm:$0xf]
        %v1788 = vld [vmem:[#allocation7 + $0x2d4] sm:$0xf]
        %v1789 = vld [vmem:[#allocation7 + $0x2d8] sm:$0xf]
        %v1790 = vld [vmem:[#allocation7 + $0x2dc] sm:$0xf]
        %v1791 = vld [vmem:[#allocation7 + $0x2e0] sm:$0xf]
        %v1792 = vld [vmem:[#allocation7 + $0x2e4] sm:$0xf]
        %v1793 = vld [vmem:[#allocation7 + $0x2e8] sm:$0xf]
        %v1794 = vld [vmem:[#allocation7 + $0x2ec] sm:$0xf]
        %v1795 = vld [vmem:[#allocation7 + $0x2f0] sm:$0xf]
        %v1796 = vld [vmem:[#allocation7 + $0x2f4] sm:$0xf]
        %v1797 = vld [vmem:[#allocation7 + $0x2f8] sm:$0xf]
        %v1798 = vld [vmem:[#allocation7 + $0x2fc] sm:$0xf]
        %v1799 = vld [vmem:[#allocation7 + $0x300] sm:$0xf]
        %v1800 = vld [vmem:[#allocation7 + $0x304] sm:$0xf]
        %v1801 = vld [vmem:[#allocation7 + $0x308] sm:$0xf]
        %v1802 = vld [vmem:[#allocation7 + $0x30c] sm:$0xf]
        %v1803 = vld [vmem:[#allocation7 + $0x310] sm:$0xf]
        %v1804 = vld [vmem:[#allocation7 + $0x314] sm:$0xf]
        %v1805 = vld [vmem:[#allocation7 + $0x318] sm:$0xf]
        %v1806 = vld [vmem:[#allocation7 + $0x31c] sm:$0xf]
        %v1807 = vld [vmem:[#allocation7 + $0x320] sm:$0xf]
        %v1808 = vld [vmem:[#allocation7 + $0x324] sm:$0xf]
        %v1809 = vld [vmem:[#allocation7 + $0x328] sm:$0xf]
        %v1810 = vld [vmem:[#allocation7 + $0x32c] sm:$0xf]
        %v1811 = vld [vmem:[#allocation7 + $0x330] sm:$0xf]
        %v1812 = vld [vmem:[#allocation7 + $0x334] sm:$0xf]
        %v1813 = vld [vmem:[#allocation7 + $0x338] sm:$0xf]
        %v1814 = vld [vmem:[#allocation7 + $0x33c] sm:$0xf]
        %v1815 = vld [vmem:[#allocation8 + $0x300] sm:$0xff]
        %v1816 = vld [vmem:[#allocation8 + $0x308] sm:$0xff]
        %v1817 = vld [vmem:[#allocation8 + $0x310] sm:$0xff]
        %v1818 = vld [vmem:[#allocation8 + $0x318] sm:$0xff]
        %v1819 = vld [vmem:[#allocation8 + $0x320] sm:$0xff]
        %v1820 = vld [vmem:[#allocation8 + $0x328] sm:$0xff]
        %v1821 = vld [vmem:[#allocation8 + $0x330] sm:$0xff]
        %v1822 = vld [vmem:[#allocation8 + $0x338] sm:$0xff]
        %v1823 = vld [vmem:[#allocation8 + $0x340] sm:$0xff]
        %v1824 = vld [vmem:[#allocation8 + $0x348] sm:$0xff]
        %v1825 = vld [vmem:[#allocation8 + $0x350] sm:$0xff]
        %v1826 = vld [vmem:[#allocation8 + $0x358] sm:$0xff]
        %v1827 = vld [vmem:[#allocation8 + $0x360] sm:$0xff]
        %v1828 = vld [vmem:[#allocation8 + $0x368] sm:$0xff]
        %v1829 = vld [vmem:[#allocation8 + $0x370] sm:$0xff]
        %v1830 = vld [vmem:[#allocation8 + $0x378] sm:$0xff]
        %v1831 = vld [vmem:[#allocation8 + $0x380] sm:$0xff]
        %v1832 = vld [vmem:[#allocation8 + $0x388] sm:$0xff]
        %v1833 = vld [vmem:[#allocation8 + $0x390] sm:$0xff]
        %v1834 = vld [vmem:[#allocation8 + $0x398] sm:$0xff]
        %v1835 = vld [vmem:[#allocation8 + $0x3a0] sm:$0xff]
        %v1836 = vld [vmem:[#allocation8 + $0x3a8] sm:$0xff]
        %v1837 = vld [vmem:[#allocation8 + $0x3b0] sm:$0xff]
        %v1838 = vld [vmem:[#allocation8 + $0x3b8] sm:$0xff]
        %v1839 = vld [vmem:[#allocation8 + $0x3c0] sm:$0xff]
        %v1840 = vld [vmem:[#allocation8 + $0x3c8] sm:$0xff]
        %v1841 = vld [vmem:[#allocation8 + $0x3d0] sm:$0xff]
        %v1842 = vld [vmem:[#allocation8 + $0x3d8] sm:$0xff]
        %v1843 = vld [vmem:[#allocation8 + $0x3e0] sm:$0xff]
        %v1844 = vld [vmem:[#allocation8 + $0x3e8] sm:$0xff]
        %v1845 = vld [vmem:[#allocation8 + $0x3f0] sm:$0xff]
        %v1846 = vld [vmem:[#allocation8 + $0x3f8] sm:$0xff]
        %v1847 = vmul.f32 %v1745, %v311
        %v1848 = vmul.f32 %v1746, %v312
        %v1849 = vadd.f32 %v1847, %v1749
        %v1850 = vadd.f32 %v1848, %v1750
        %v1883 = vunpack.c.l.b16 %v1783
        %v1884 = vunpack.c.l.b16 %v1784
        %v1885 = vunpack.c.l.b16 %v1785
        %v1886 = vunpack.c.l.b16 %v1786
        %v1887 = vunpack.c.l.b16 %v1787
        %v1888 = vunpack.c.l.b16 %v1788
        %v1889 = vunpack.c.l.b16 %v1789
        %v1890 = vunpack.c.l.b16 %v1790
        %v1891 = vunpack.c.l.b16 %v1791
        %v1892 = vunpack.c.l.b16 %v1792
        %v1893 = vunpack.c.l.b16 %v1793
        %v1894 = vunpack.c.l.b16 %v1794
        %v1895 = vunpack.c.l.b16 %v1795
        %v1896 = vunpack.c.l.b16 %v1796
        %v1897 = vunpack.c.l.b16 %v1797
        %v1898 = vunpack.c.l.b16 %v1798
        %v1899 = vunpack.c.l.b16 %v1799
        %v1900 = vunpack.c.l.b16 %v1800
        %v1901 = vunpack.c.l.b16 %v1801
        %v1902 = vunpack.c.l.b16 %v1802
        %v1903 = vunpack.c.l.b16 %v1803
        %v1904 = vunpack.c.l.b16 %v1804
        %v1905 = vunpack.c.l.b16 %v1805
        %v1906 = vunpack.c.l.b16 %v1806
        %v1907 = vunpack.c.l.b16 %v1807
        %v1908 = vunpack.c.l.b16 %v1808
        %v1909 = vunpack.c.l.b16 %v1809
        %v1910 = vunpack.c.l.b16 %v1810
        %v1911 = vunpack.c.l.b16 %v1811
        %v1912 = vunpack.c.l.b16 %v1812
        %v1913 = vunpack.c.l.b16 %v1813
        %v1914 = vunpack.c.l.b16 %v1814
        %v1915 = vpack.c.b16 %v1884, %v1883
        %v1916 = vpack.c.b16 %v1886, %v1885
        %v1917 = vpack.c.b16 %v1888, %v1887
        %v1918 = vpack.c.b16 %v1890, %v1889
        %v1919 = vpack.c.b16 %v1892, %v1891
        %v1920 = vpack.c.b16 %v1894, %v1893
        %v1921 = vpack.c.b16 %v1896, %v1895
        %v1922 = vpack.c.b16 %v1898, %v1897
        %v1923 = vpack.c.b16 %v1900, %v1899
        %v1924 = vpack.c.b16 %v1902, %v1901
        %v1925 = vpack.c.b16 %v1904, %v1903
        %v1926 = vpack.c.b16 %v1906, %v1905
        %v1927 = vpack.c.b16 %v1908, %v1907
        %v1928 = vpack.c.b16 %v1910, %v1909
        %v1929 = vpack.c.b16 %v1912, %v1911
        %v1930 = vpack.c.b16 %v1914, %v1913
        %1947 = vmatpush.bf16.msra.mxu0 %v1922
        %1948 = vmatpush.bf16.msra.mxu0 %v1921
        %1949 = vmatpush.bf16.msra.mxu0 %v1920
        %1950 = vmatpush.bf16.msra.mxu0 %v1919
        %1951 = vmatpush.bf16.msra.mxu0 %v1918
        %1952 = vmatpush.bf16.msra.mxu0 %v1917
        %1953 = vmatpush.bf16.msra.mxu0 %v1916
        %1954 = vmatpush.bf16.msra.mxu0 %v1915
        %1955 = vmatmul.f32.gmra.mxu0 %v1849
        %v1956 = vpop.f32.mrf.mxu0
        %v1957 = vadd.f32 0.0, %v1956
        %1958 = vdwg.mxu0
        %1959 = vmatpush.bf16.msra.mxu0 %v1930
        %1960 = vmatpush.bf16.msra.mxu0 %v1929
        %1961 = vmatpush.bf16.msra.mxu0 %v1928
        %1962 = vmatpush.bf16.msra.mxu0 %v1927
        %1963 = vmatpush.bf16.msra.mxu0 %v1926
        %1964 = vmatpush.bf16.msra.mxu0 %v1925
        %1965 = vmatpush.bf16.msra.mxu0 %v1924
        %1966 = vmatpush.bf16.msra.mxu0 %v1923
        %1967 = vmatmul.f32.gmra.mxu0 %v1850
        %v1968 = vpop.f32.mrf.mxu0
        %v1969 = vadd.f32 %v1957, %v1968
        %1970 = vdwg.mxu0
        %v1971 = vperm.slane %v290, 3
        %v1972 = vperm.slane %v290, 4
        %v2007 = vunpack.c.l.b16 %v1751
        %v2008 = vunpack.c.l.b16 %v1752
        %v2009 = vunpack.c.l.b16 %v1753
        %v2010 = vunpack.c.l.b16 %v1754
        %v2011 = vunpack.c.l.b16 %v1755
        %v2012 = vunpack.c.l.b16 %v1756
        %v2013 = vunpack.c.l.b16 %v1757
        %v2014 = vunpack.c.l.b16 %v1758
        %v2015 = vunpack.c.l.b16 %v1759
        %v2016 = vunpack.c.l.b16 %v1760
        %v2017 = vunpack.c.l.b16 %v1761
        %v2018 = vunpack.c.l.b16 %v1762
        %v2019 = vunpack.c.l.b16 %v1763
        %v2020 = vunpack.c.l.b16 %v1764
        %v2021 = vunpack.c.l.b16 %v1765
        %v2022 = vunpack.c.l.b16 %v1766
        %v2023 = vunpack.c.l.b16 %v1767
        %v2024 = vunpack.c.l.b16 %v1768
        %v2025 = vunpack.c.l.b16 %v1769
        %v2026 = vunpack.c.l.b16 %v1770
        %v2027 = vunpack.c.l.b16 %v1771
        %v2028 = vunpack.c.l.b16 %v1772
        %v2029 = vunpack.c.l.b16 %v1773
        %v2030 = vunpack.c.l.b16 %v1774
        %v2031 = vunpack.c.l.b16 %v1775
        %v2032 = vunpack.c.l.b16 %v1776
        %v2033 = vunpack.c.l.b16 %v1777
        %v2034 = vunpack.c.l.b16 %v1778
        %v2035 = vunpack.c.l.b16 %v1779
        %v2036 = vunpack.c.l.b16 %v1780
        %v2037 = vunpack.c.l.b16 %v1781
        %v2038 = vunpack.c.l.b16 %v1782
        %v2039 = vpack.c.b16 %v2008, %v2007
        %v2040 = vpack.c.b16 %v2010, %v2009
        %v2041 = vpack.c.b16 %v2012, %v2011
        %v2042 = vpack.c.b16 %v2014, %v2013
        %v2043 = vpack.c.b16 %v2016, %v2015
        %v2044 = vpack.c.b16 %v2018, %v2017
        %v2045 = vpack.c.b16 %v2020, %v2019
        %v2046 = vpack.c.b16 %v2022, %v2021
        %v2047 = vpack.c.b16 %v2024, %v2023
        %v2048 = vpack.c.b16 %v2026, %v2025
        %v2049 = vpack.c.b16 %v2028, %v2027
        %v2050 = vpack.c.b16 %v2030, %v2029
        %v2051 = vpack.c.b16 %v2032, %v2031
        %v2052 = vpack.c.b16 %v2034, %v2033
        %v2053 = vpack.c.b16 %v2036, %v2035
        %v2054 = vpack.c.b16 %v2038, %v2037
        %2071 = vmatpush.bf16.msra.mxu0 %v2046
        %2072 = vmatpush.bf16.msra.mxu0 %v2045
        %2073 = vmatpush.bf16.msra.mxu0 %v2044
        %2074 = vmatpush.bf16.msra.mxu0 %v2043
        %2075 = vmatpush.bf16.msra.mxu0 %v2042
        %2076 = vmatpush.bf16.msra.mxu0 %v2041
        %2077 = vmatpush.bf16.msra.mxu0 %v2040
        %2078 = vmatpush.bf16.msra.mxu0 %v2039
        %2079 = vmatmul.f32.gmra.mxu0 %v1971
        %v2080 = vpop.f32.mrf.mxu0
        %v2081 = vadd.f32 %v1969, %v2080
        %2082 = vdwg.mxu0
        %2083 = vmatpush.bf16.msra.mxu0 %v2054
        %2084 = vmatpush.bf16.msra.mxu0 %v2053
        %2085 = vmatpush.bf16.msra.mxu0 %v2052
        %2086 = vmatpush.bf16.msra.mxu0 %v2051
        %2087 = vmatpush.bf16.msra.mxu0 %v2050
        %2088 = vmatpush.bf16.msra.mxu0 %v2049
        %2089 = vmatpush.bf16.msra.mxu0 %v2048
        %2090 = vmatpush.bf16.msra.mxu0 %v2047
        %2091 = vmatmul.f32.gmra.mxu0 %v1972
        %v2092 = vpop.f32.mrf.mxu0
        %v2093 = vadd.f32 %v2081, %v2092
        %2094 = vdwg.mxu0
        %v2095 = vmax.f32 %v2093, 0.0
        %v2128 = vunpack.c.l.b16 %v1815
        %v2129 = vunpack.c.h.b16 %v1815
        %v2130 = vunpack.c.l.b16 %v1816
        %v2131 = vunpack.c.h.b16 %v1816
        %v2132 = vunpack.c.l.b16 %v1817
        %v2133 = vunpack.c.h.b16 %v1817
        %v2134 = vunpack.c.l.b16 %v1818
        %v2135 = vunpack.c.h.b16 %v1818
        %v2136 = vunpack.c.l.b16 %v1819
        %v2137 = vunpack.c.h.b16 %v1819
        %v2138 = vunpack.c.l.b16 %v1820
        %v2139 = vunpack.c.h.b16 %v1820
        %v2140 = vunpack.c.l.b16 %v1821
        %v2141 = vunpack.c.h.b16 %v1821
        %v2142 = vunpack.c.l.b16 %v1822
        %v2143 = vunpack.c.h.b16 %v1822
        %v2144 = vunpack.c.l.b16 %v1823
        %v2145 = vunpack.c.h.b16 %v1823
        %v2146 = vunpack.c.l.b16 %v1824
        %v2147 = vunpack.c.h.b16 %v1824
        %v2148 = vunpack.c.l.b16 %v1825
        %v2149 = vunpack.c.h.b16 %v1825
        %v2150 = vunpack.c.l.b16 %v1826
        %v2151 = vunpack.c.h.b16 %v1826
        %v2152 = vunpack.c.l.b16 %v1827
        %v2153 = vunpack.c.h.b16 %v1827
        %v2154 = vunpack.c.l.b16 %v1828
        %v2155 = vunpack.c.h.b16 %v1828
        %v2156 = vunpack.c.l.b16 %v1829
        %v2157 = vunpack.c.h.b16 %v1829
        %v2158 = vunpack.c.l.b16 %v1830
        %v2159 = vunpack.c.h.b16 %v1830
        %v2160 = vunpack.c.l.b16 %v1831
        %v2161 = vunpack.c.h.b16 %v1831
        %v2162 = vunpack.c.l.b16 %v1832
        %v2163 = vunpack.c.h.b16 %v1832
        %v2164 = vunpack.c.l.b16 %v1833
        %v2165 = vunpack.c.h.b16 %v1833
        %v2166 = vunpack.c.l.b16 %v1834
        %v2167 = vunpack.c.h.b16 %v1834
        %v2168 = vunpack.c.l.b16 %v1835
        %v2169 = vunpack.c.h.b16 %v1835
        %v2170 = vunpack.c.l.b16 %v1836
        %v2171 = vunpack.c.h.b16 %v1836
        %v2172 = vunpack.c.l.b16 %v1837
        %v2173 = vunpack.c.h.b16 %v1837
        %v2174 = vunpack.c.l.b16 %v1838
        %v2175 = vunpack.c.h.b16 %v1838
        %v2176 = vunpack.c.l.b16 %v1839
        %v2177 = vunpack.c.h.b16 %v1839
        %v2178 = vunpack.c.l.b16 %v1840
        %v2179 = vunpack.c.h.b16 %v1840
        %v2180 = vunpack.c.l.b16 %v1841
        %v2181 = vunpack.c.h.b16 %v1841
        %v2182 = vunpack.c.l.b16 %v1842
        %v2183 = vunpack.c.h.b16 %v1842
        %v2184 = vunpack.c.l.b16 %v1843
        %v2185 = vunpack.c.h.b16 %v1843
        %v2186 = vunpack.c.l.b16 %v1844
        %v2187 = vunpack.c.h.b16 %v1844
        %v2188 = vunpack.c.l.b16 %v1845
        %v2189 = vunpack.c.h.b16 %v1845
        %v2190 = vunpack.c.l.b16 %v1846
        %v2191 = vunpack.c.h.b16 %v1846
        %v2192 = vpack.c.b16 %v2132, %v2128
        %v2193 = vpack.c.b16 %v2133, %v2129
        %v2194 = vpack.c.b16 %v2134, %v2130
        %v2195 = vpack.c.b16 %v2135, %v2131
        %v2196 = vpack.c.b16 %v2140, %v2136
        %v2197 = vpack.c.b16 %v2141, %v2137
        %v2198 = vpack.c.b16 %v2142, %v2138
        %v2199 = vpack.c.b16 %v2143, %v2139
        %v2200 = vpack.c.b16 %v2148, %v2144
        %v2201 = vpack.c.b16 %v2149, %v2145
        %v2202 = vpack.c.b16 %v2150, %v2146
        %v2203 = vpack.c.b16 %v2151, %v2147
        %v2204 = vpack.c.b16 %v2156, %v2152
        %v2205 = vpack.c.b16 %v2157, %v2153
        %v2206 = vpack.c.b16 %v2158, %v2154
        %v2207 = vpack.c.b16 %v2159, %v2155
        %v2208 = vpack.c.b16 %v2164, %v2160
        %v2209 = vpack.c.b16 %v2165, %v2161
        %v2210 = vpack.c.b16 %v2166, %v2162
        %v2211 = vpack.c.b16 %v2167, %v2163
        %v2212 = vpack.c.b16 %v2172, %v2168
        %v2213 = vpack.c.b16 %v2173, %v2169
        %v2214 = vpack.c.b16 %v2174, %v2170
        %v2215 = vpack.c.b16 %v2175, %v2171
        %v2216 = vpack.c.b16 %v2180, %v2176
        %v2217 = vpack.c.b16 %v2181, %v2177
        %v2218 = vpack.c.b16 %v2182, %v2178
        %v2219 = vpack.c.b16 %v2183, %v2179
        %v2220 = vpack.c.b16 %v2188, %v2184
        %v2221 = vpack.c.b16 %v2189, %v2185
        %v2222 = vpack.c.b16 %v2190, %v2186
        %v2223 = vpack.c.b16 %v2191, %v2187
        %2256 = vmatpush.bf16.msra.mxu0 %v2220
        %2257 = vmatpush.bf16.msra.mxu0 %v2216
        %2258 = vmatpush.bf16.msra.mxu0 %v2212
        %2259 = vmatpush.bf16.msra.mxu0 %v2208
        %2260 = vmatpush.bf16.msra.mxu0 %v2204
        %2261 = vmatpush.bf16.msra.mxu0 %v2200
        %2262 = vmatpush.bf16.msra.mxu0 %v2196
        %2263 = vmatpush.bf16.msra.mxu0 %v2192
        %2264 = vmatmul.f32.gmra.mxu0 %v2095
        %v2265 = vpop.f32.mrf.mxu0
        %v2266 = vadd.f32 0.0, %v2265
        %2267 = vdwg.mxu0
        %2268 = vmatpush.bf16.msra.mxu0 %v2221
        %2269 = vmatpush.bf16.msra.mxu0 %v2217
        %2270 = vmatpush.bf16.msra.mxu0 %v2213
        %2271 = vmatpush.bf16.msra.mxu0 %v2209
        %2272 = vmatpush.bf16.msra.mxu0 %v2205
        %2273 = vmatpush.bf16.msra.mxu0 %v2201
        %2274 = vmatpush.bf16.msra.mxu0 %v2197
        %2275 = vmatpush.bf16.msra.mxu0 %v2193
        %2276 = vmatmul.f32.gmra.mxu0 %v2095
        %v2277 = vpop.f32.mrf.mxu0
        %v2278 = vadd.f32 0.0, %v2277
        %2279 = vdwg.mxu0
        %2280 = vmatpush.bf16.msra.mxu0 %v2222
        %2281 = vmatpush.bf16.msra.mxu0 %v2218
        %2282 = vmatpush.bf16.msra.mxu0 %v2214
        %2283 = vmatpush.bf16.msra.mxu0 %v2210
        %2284 = vmatpush.bf16.msra.mxu0 %v2206
        %2285 = vmatpush.bf16.msra.mxu0 %v2202
        %2286 = vmatpush.bf16.msra.mxu0 %v2198
        %2287 = vmatpush.bf16.msra.mxu0 %v2194
        %2288 = vmatmul.f32.gmra.mxu0 %v2095
        %v2289 = vpop.f32.mrf.mxu0
        %v2290 = vadd.f32 0.0, %v2289
        %2291 = vdwg.mxu0
        %2292 = vmatpush.bf16.msra.mxu0 %v2223
        %2293 = vmatpush.bf16.msra.mxu0 %v2219
        %2294 = vmatpush.bf16.msra.mxu0 %v2215
        %2295 = vmatpush.bf16.msra.mxu0 %v2211
        %2296 = vmatpush.bf16.msra.mxu0 %v2207
        %2297 = vmatpush.bf16.msra.mxu0 %v2203
        %2298 = vmatpush.bf16.msra.mxu0 %v2199
        %2299 = vmatpush.bf16.msra.mxu0 %v2195
        %2300 = vmatmul.f32.gmra.mxu0 %v2095
        %v2301 = vpop.f32.mrf.mxu0
        %v2302 = vadd.f32 0.0, %v2301
        %2303 = vdwg.mxu0
        %v2304 = vmul.f32 %v2266, %v1745
        %v2305 = vmul.f32 %v2278, %v1746
        %v2306 = vmul.f32 %v2266, %v1749
        %v2307 = vmul.f32 %v2278, %v1750
        %v2308 = vadd.f32 %v2306, %v2290
        %v2309 = vadd.f32 %v2307, %v2302
        %v2310 = vld [vmem:[#allocation7 + $0x340] sm:$0xf]
        %v2311 = vld [vmem:[#allocation7 + $0x344] sm:$0xf]
        %v2312 = vld [vmem:[#allocation7 + $0x348] sm:$0xf]
        %v2313 = vld [vmem:[#allocation7 + $0x34c] sm:$0xf]
        %v2314 = vld [vmem:[#allocation7 + $0x350] sm:$0xf]
        %v2315 = vld [vmem:[#allocation7 + $0x354] sm:$0xf]
        %v2316 = vld [vmem:[#allocation7 + $0x358] sm:$0xf]
        %v2317 = vld [vmem:[#allocation7 + $0x35c] sm:$0xf]
        %v2318 = vld [vmem:[#allocation7 + $0x360] sm:$0xf]
        %v2319 = vld [vmem:[#allocation7 + $0x364] sm:$0xf]
        %v2320 = vld [vmem:[#allocation7 + $0x368] sm:$0xf]
        %v2321 = vld [vmem:[#allocation7 + $0x36c] sm:$0xf]
        %v2322 = vld [vmem:[#allocation7 + $0x370] sm:$0xf]
        %v2323 = vld [vmem:[#allocation7 + $0x374] sm:$0xf]
        %v2324 = vld [vmem:[#allocation7 + $0x378] sm:$0xf]
        %v2325 = vld [vmem:[#allocation7 + $0x37c] sm:$0xf]
        %v2326 = vld [vmem:[#allocation7 + $0x380] sm:$0xf]
        %v2327 = vld [vmem:[#allocation7 + $0x384] sm:$0xf]
        %v2328 = vld [vmem:[#allocation7 + $0x388] sm:$0xf]
        %v2329 = vld [vmem:[#allocation7 + $0x38c] sm:$0xf]
        %v2330 = vld [vmem:[#allocation7 + $0x390] sm:$0xf]
        %v2331 = vld [vmem:[#allocation7 + $0x394] sm:$0xf]
        %v2332 = vld [vmem:[#allocation7 + $0x398] sm:$0xf]
        %v2333 = vld [vmem:[#allocation7 + $0x39c] sm:$0xf]
        %v2334 = vld [vmem:[#allocation7 + $0x3a0] sm:$0xf]
        %v2335 = vld [vmem:[#allocation7 + $0x3a4] sm:$0xf]
        %v2336 = vld [vmem:[#allocation7 + $0x3a8] sm:$0xf]
        %v2337 = vld [vmem:[#allocation7 + $0x3ac] sm:$0xf]
        %v2338 = vld [vmem:[#allocation7 + $0x3b0] sm:$0xf]
        %v2339 = vld [vmem:[#allocation7 + $0x3b4] sm:$0xf]
        %v2340 = vld [vmem:[#allocation7 + $0x3b8] sm:$0xf]
        %v2341 = vld [vmem:[#allocation7 + $0x3bc] sm:$0xf]
        %v2342 = vld [vmem:[#allocation7 + $0x3c0] sm:$0xf]
        %v2343 = vld [vmem:[#allocation7 + $0x3c4] sm:$0xf]
        %v2344 = vld [vmem:[#allocation7 + $0x3c8] sm:$0xf]
        %v2345 = vld [vmem:[#allocation7 + $0x3cc] sm:$0xf]
        %v2346 = vld [vmem:[#allocation7 + $0x3d0] sm:$0xf]
        %v2347 = vld [vmem:[#allocation7 + $0x3d4] sm:$0xf]
        %v2348 = vld [vmem:[#allocation7 + $0x3d8] sm:$0xf]
        %v2349 = vld [vmem:[#allocation7 + $0x3dc] sm:$0xf]
        %v2350 = vld [vmem:[#allocation7 + $0x3e0] sm:$0xf]
        %v2351 = vld [vmem:[#allocation7 + $0x3e4] sm:$0xf]
        %v2352 = vld [vmem:[#allocation7 + $0x3e8] sm:$0xf]
        %v2353 = vld [vmem:[#allocation7 + $0x3ec] sm:$0xf]
        %v2354 = vld [vmem:[#allocation7 + $0x3f0] sm:$0xf]
        %v2355 = vld [vmem:[#allocation7 + $0x3f4] sm:$0xf]
        %v2356 = vld [vmem:[#allocation7 + $0x3f8] sm:$0xf]
        %v2357 = vld [vmem:[#allocation7 + $0x3fc] sm:$0xf]
        %v2358 = vld [vmem:[#allocation7 + $0x400] sm:$0xf]
        %v2359 = vld [vmem:[#allocation7 + $0x404] sm:$0xf]
        %v2360 = vld [vmem:[#allocation7 + $0x408] sm:$0xf]
        %v2361 = vld [vmem:[#allocation7 + $0x40c] sm:$0xf]
        %v2362 = vld [vmem:[#allocation7 + $0x410] sm:$0xf]
        %v2363 = vld [vmem:[#allocation7 + $0x414] sm:$0xf]
        %v2364 = vld [vmem:[#allocation7 + $0x418] sm:$0xf]
        %v2365 = vld [vmem:[#allocation7 + $0x41c] sm:$0xf]
        %v2366 = vld [vmem:[#allocation7 + $0x420] sm:$0xf]
        %v2367 = vld [vmem:[#allocation7 + $0x424] sm:$0xf]
        %v2368 = vld [vmem:[#allocation7 + $0x428] sm:$0xf]
        %v2369 = vld [vmem:[#allocation7 + $0x42c] sm:$0xf]
        %v2370 = vld [vmem:[#allocation7 + $0x430] sm:$0xf]
        %v2371 = vld [vmem:[#allocation7 + $0x434] sm:$0xf]
        %v2372 = vld [vmem:[#allocation7 + $0x438] sm:$0xf]
        %v2373 = vld [vmem:[#allocation7 + $0x43c] sm:$0xf]
        %v2374 = vld [vmem:[#allocation7 + $0x440] sm:$0xf]
        %v2375 = vld [vmem:[#allocation7 + $0x444] sm:$0xf]
        %v2376 = vld [vmem:[#allocation7 + $0x448] sm:$0xf]
        %v2377 = vld [vmem:[#allocation7 + $0x44c] sm:$0xf]
        %v2378 = vld [vmem:[#allocation7 + $0x450] sm:$0xf]
        %v2379 = vld [vmem:[#allocation7 + $0x454] sm:$0xf]
        %v2380 = vld [vmem:[#allocation7 + $0x458] sm:$0xf]
        %v2381 = vld [vmem:[#allocation7 + $0x45c] sm:$0xf]
        %v2382 = vld [vmem:[#allocation7 + $0x460] sm:$0xf]
        %v2383 = vld [vmem:[#allocation7 + $0x464] sm:$0xf]
        %v2384 = vld [vmem:[#allocation7 + $0x468] sm:$0xf]
        %v2385 = vld [vmem:[#allocation7 + $0x46c] sm:$0xf]
        %v2386 = vld [vmem:[#allocation7 + $0x470] sm:$0xf]
        %v2387 = vld [vmem:[#allocation7 + $0x474] sm:$0xf]
        %v2388 = vld [vmem:[#allocation7 + $0x478] sm:$0xf]
        %v2389 = vld [vmem:[#allocation7 + $0x47c] sm:$0xf]
        %v2390 = vld [vmem:[#allocation7 + $0x480] sm:$0xf]
        %v2391 = vld [vmem:[#allocation7 + $0x484] sm:$0xf]
        %v2392 = vld [vmem:[#allocation7 + $0x488] sm:$0xf]
        %v2393 = vld [vmem:[#allocation7 + $0x48c] sm:$0xf]
        %v2394 = vld [vmem:[#allocation7 + $0x490] sm:$0xf]
        %v2395 = vld [vmem:[#allocation7 + $0x494] sm:$0xf]
        %v2396 = vld [vmem:[#allocation7 + $0x498] sm:$0xf]
        %v2397 = vld [vmem:[#allocation7 + $0x49c] sm:$0xf]
        %v2398 = vld [vmem:[#allocation7 + $0x4a0] sm:$0xf]
        %v2399 = vld [vmem:[#allocation7 + $0x4a4] sm:$0xf]
        %v2400 = vld [vmem:[#allocation7 + $0x4a8] sm:$0xf]
        %v2401 = vld [vmem:[#allocation7 + $0x4ac] sm:$0xf]
        %v2402 = vld [vmem:[#allocation7 + $0x4b0] sm:$0xf]
        %v2403 = vld [vmem:[#allocation7 + $0x4b4] sm:$0xf]
        %v2404 = vld [vmem:[#allocation7 + $0x4b8] sm:$0xf]
        %v2405 = vld [vmem:[#allocation7 + $0x4bc] sm:$0xf]
        %v2406 = vld [vmem:[#allocation8 + $0x400] sm:$0xff]
        %v2407 = vld [vmem:[#allocation8 + $0x408] sm:$0xff]
        %v2408 = vld [vmem:[#allocation8 + $0x410] sm:$0xff]
        %v2409 = vld [vmem:[#allocation8 + $0x418] sm:$0xff]
        %v2410 = vld [vmem:[#allocation8 + $0x420] sm:$0xff]
        %v2411 = vld [vmem:[#allocation8 + $0x428] sm:$0xff]
        %v2412 = vld [vmem:[#allocation8 + $0x430] sm:$0xff]
        %v2413 = vld [vmem:[#allocation8 + $0x438] sm:$0xff]
        %v2414 = vld [vmem:[#allocation8 + $0x440] sm:$0xff]
        %v2415 = vld [vmem:[#allocation8 + $0x448] sm:$0xff]
        %v2416 = vld [vmem:[#allocation8 + $0x450] sm:$0xff]
        %v2417 = vld [vmem:[#allocation8 + $0x458] sm:$0xff]
        %v2418 = vld [vmem:[#allocation8 + $0x460] sm:$0xff]
        %v2419 = vld [vmem:[#allocation8 + $0x468] sm:$0xff]
        %v2420 = vld [vmem:[#allocation8 + $0x470] sm:$0xff]
        %v2421 = vld [vmem:[#allocation8 + $0x478] sm:$0xff]
        %v2422 = vld [vmem:[#allocation8 + $0x480] sm:$0xff]
        %v2423 = vld [vmem:[#allocation8 + $0x488] sm:$0xff]
        %v2424 = vld [vmem:[#allocation8 + $0x490] sm:$0xff]
        %v2425 = vld [vmem:[#allocation8 + $0x498] sm:$0xff]
        %v2426 = vld [vmem:[#allocation8 + $0x4a0] sm:$0xff]
        %v2427 = vld [vmem:[#allocation8 + $0x4a8] sm:$0xff]
        %v2428 = vld [vmem:[#allocation8 + $0x4b0] sm:$0xff]
        %v2429 = vld [vmem:[#allocation8 + $0x4b8] sm:$0xff]
        %v2430 = vld [vmem:[#allocation8 + $0x4c0] sm:$0xff]
        %v2431 = vld [vmem:[#allocation8 + $0x4c8] sm:$0xff]
        %v2432 = vld [vmem:[#allocation8 + $0x4d0] sm:$0xff]
        %v2433 = vld [vmem:[#allocation8 + $0x4d8] sm:$0xff]
        %v2434 = vld [vmem:[#allocation8 + $0x4e0] sm:$0xff]
        %v2435 = vld [vmem:[#allocation8 + $0x4e8] sm:$0xff]
        %v2436 = vld [vmem:[#allocation8 + $0x4f0] sm:$0xff]
        %v2437 = vld [vmem:[#allocation8 + $0x4f8] sm:$0xff]
        %v2438 = vmul.f32 %v2304, %v311
        %v2439 = vmul.f32 %v2305, %v312
        %v2440 = vadd.f32 %v2438, %v2308
        %v2441 = vadd.f32 %v2439, %v2309
        %v2474 = vunpack.c.l.b16 %v2374
        %v2475 = vunpack.c.l.b16 %v2375
        %v2476 = vunpack.c.l.b16 %v2376
        %v2477 = vunpack.c.l.b16 %v2377
        %v2478 = vunpack.c.l.b16 %v2378
        %v2479 = vunpack.c.l.b16 %v2379
        %v2480 = vunpack.c.l.b16 %v2380
        %v2481 = vunpack.c.l.b16 %v2381
        %v2482 = vunpack.c.l.b16 %v2382
        %v2483 = vunpack.c.l.b16 %v2383
        %v2484 = vunpack.c.l.b16 %v2384
        %v2485 = vunpack.c.l.b16 %v2385
        %v2486 = vunpack.c.l.b16 %v2386
        %v2487 = vunpack.c.l.b16 %v2387
        %v2488 = vunpack.c.l.b16 %v2388
        %v2489 = vunpack.c.l.b16 %v2389
        %v2490 = vunpack.c.l.b16 %v2390
        %v2491 = vunpack.c.l.b16 %v2391
        %v2492 = vunpack.c.l.b16 %v2392
        %v2493 = vunpack.c.l.b16 %v2393
        %v2494 = vunpack.c.l.b16 %v2394
        %v2495 = vunpack.c.l.b16 %v2395
        %v2496 = vunpack.c.l.b16 %v2396
        %v2497 = vunpack.c.l.b16 %v2397
        %v2498 = vunpack.c.l.b16 %v2398
        %v2499 = vunpack.c.l.b16 %v2399
        %v2500 = vunpack.c.l.b16 %v2400
        %v2501 = vunpack.c.l.b16 %v2401
        %v2502 = vunpack.c.l.b16 %v2402
        %v2503 = vunpack.c.l.b16 %v2403
        %v2504 = vunpack.c.l.b16 %v2404
        %v2505 = vunpack.c.l.b16 %v2405
        %v2506 = vpack.c.b16 %v2475, %v2474
        %v2507 = vpack.c.b16 %v2477, %v2476
        %v2508 = vpack.c.b16 %v2479, %v2478
        %v2509 = vpack.c.b16 %v2481, %v2480
        %v2510 = vpack.c.b16 %v2483, %v2482
        %v2511 = vpack.c.b16 %v2485, %v2484
        %v2512 = vpack.c.b16 %v2487, %v2486
        %v2513 = vpack.c.b16 %v2489, %v2488
        %v2514 = vpack.c.b16 %v2491, %v2490
        %v2515 = vpack.c.b16 %v2493, %v2492
        %v2516 = vpack.c.b16 %v2495, %v2494
        %v2517 = vpack.c.b16 %v2497, %v2496
        %v2518 = vpack.c.b16 %v2499, %v2498
        %v2519 = vpack.c.b16 %v2501, %v2500
        %v2520 = vpack.c.b16 %v2503, %v2502
        %v2521 = vpack.c.b16 %v2505, %v2504
        %2538 = vmatpush.bf16.msra.mxu0 %v2513
        %2539 = vmatpush.bf16.msra.mxu0 %v2512
        %2540 = vmatpush.bf16.msra.mxu0 %v2511
        %2541 = vmatpush.bf16.msra.mxu0 %v2510
        %2542 = vmatpush.bf16.msra.mxu0 %v2509
        %2543 = vmatpush.bf16.msra.mxu0 %v2508
        %2544 = vmatpush.bf16.msra.mxu0 %v2507
        %2545 = vmatpush.bf16.msra.mxu0 %v2506
        %2546 = vmatmul.f32.gmra.mxu0 %v2440
        %v2547 = vpop.f32.mrf.mxu0
        %v2548 = vadd.f32 0.0, %v2547
        %2549 = vdwg.mxu0
        %2550 = vmatpush.bf16.msra.mxu0 %v2521
        %2551 = vmatpush.bf16.msra.mxu0 %v2520
        %2552 = vmatpush.bf16.msra.mxu0 %v2519
        %2553 = vmatpush.bf16.msra.mxu0 %v2518
        %2554 = vmatpush.bf16.msra.mxu0 %v2517
        %2555 = vmatpush.bf16.msra.mxu0 %v2516
        %2556 = vmatpush.bf16.msra.mxu0 %v2515
        %2557 = vmatpush.bf16.msra.mxu0 %v2514
        %2558 = vmatmul.f32.gmra.mxu0 %v2441
        %v2559 = vpop.f32.mrf.mxu0
        %v2560 = vadd.f32 %v2548, %v2559
        %2561 = vdwg.mxu0
        %v2563 = vperm.slane %v290, 5
        %v2564 = vperm.slane %v290, 6
        %v2565 = vperm.slane %v290, 7
        %v2566 = vperm.slane %v291, 0
        %v2635 = vunpack.c.l.b16 %v2310
        %v2636 = vunpack.c.l.b16 %v2311
        %v2637 = vunpack.c.l.b16 %v2312
        %v2638 = vunpack.c.l.b16 %v2313
        %v2639 = vunpack.c.l.b16 %v2314
        %v2640 = vunpack.c.l.b16 %v2315
        %v2641 = vunpack.c.l.b16 %v2316
        %v2642 = vunpack.c.l.b16 %v2317
        %v2643 = vunpack.c.l.b16 %v2318
        %v2644 = vunpack.c.l.b16 %v2319
        %v2645 = vunpack.c.l.b16 %v2320
        %v2646 = vunpack.c.l.b16 %v2321
        %v2647 = vunpack.c.l.b16 %v2322
        %v2648 = vunpack.c.l.b16 %v2323
        %v2649 = vunpack.c.l.b16 %v2324
        %v2650 = vunpack.c.l.b16 %v2325
        %v2651 = vunpack.c.l.b16 %v2326
        %v2652 = vunpack.c.l.b16 %v2327
        %v2653 = vunpack.c.l.b16 %v2328
        %v2654 = vunpack.c.l.b16 %v2329
        %v2655 = vunpack.c.l.b16 %v2330
        %v2656 = vunpack.c.l.b16 %v2331
        %v2657 = vunpack.c.l.b16 %v2332
        %v2658 = vunpack.c.l.b16 %v2333
        %v2659 = vunpack.c.l.b16 %v2334
        %v2660 = vunpack.c.l.b16 %v2335
        %v2661 = vunpack.c.l.b16 %v2336
        %v2662 = vunpack.c.l.b16 %v2337
        %v2663 = vunpack.c.l.b16 %v2338
        %v2664 = vunpack.c.l.b16 %v2339
        %v2665 = vunpack.c.l.b16 %v2340
        %v2666 = vunpack.c.l.b16 %v2341
        %v2667 = vunpack.c.l.b16 %v2342
        %v2668 = vunpack.c.l.b16 %v2343
        %v2669 = vunpack.c.l.b16 %v2344
        %v2670 = vunpack.c.l.b16 %v2345
        %v2671 = vunpack.c.l.b16 %v2346
        %v2672 = vunpack.c.l.b16 %v2347
        %v2673 = vunpack.c.l.b16 %v2348
        %v2674 = vunpack.c.l.b16 %v2349
        %v2675 = vunpack.c.l.b16 %v2350
        %v2676 = vunpack.c.l.b16 %v2351
        %v2677 = vunpack.c.l.b16 %v2352
        %v2678 = vunpack.c.l.b16 %v2353
        %v2679 = vunpack.c.l.b16 %v2354
        %v2680 = vunpack.c.l.b16 %v2355
        %v2681 = vunpack.c.l.b16 %v2356
        %v2682 = vunpack.c.l.b16 %v2357
        %v2683 = vunpack.c.l.b16 %v2358
        %v2684 = vunpack.c.l.b16 %v2359
        %v2685 = vunpack.c.l.b16 %v2360
        %v2686 = vunpack.c.l.b16 %v2361
        %v2687 = vunpack.c.l.b16 %v2362
        %v2688 = vunpack.c.l.b16 %v2363
        %v2689 = vunpack.c.l.b16 %v2364
        %v2690 = vunpack.c.l.b16 %v2365
        %v2691 = vunpack.c.l.b16 %v2366
        %v2692 = vunpack.c.l.b16 %v2367
        %v2693 = vunpack.c.l.b16 %v2368
        %v2694 = vunpack.c.l.b16 %v2369
        %v2695 = vunpack.c.l.b16 %v2370
        %v2696 = vunpack.c.l.b16 %v2371
        %v2697 = vunpack.c.l.b16 %v2372
        %v2698 = vunpack.c.l.b16 %v2373
        %v2699 = vpack.c.b16 %v2636, %v2635
        %v2700 = vpack.c.b16 %v2638, %v2637
        %v2701 = vpack.c.b16 %v2640, %v2639
        %v2702 = vpack.c.b16 %v2642, %v2641
        %v2703 = vpack.c.b16 %v2644, %v2643
        %v2704 = vpack.c.b16 %v2646, %v2645
        %v2705 = vpack.c.b16 %v2648, %v2647
        %v2706 = vpack.c.b16 %v2650, %v2649
        %v2707 = vpack.c.b16 %v2652, %v2651
        %v2708 = vpack.c.b16 %v2654, %v2653
        %v2709 = vpack.c.b16 %v2656, %v2655
        %v2710 = vpack.c.b16 %v2658, %v2657
        %v2711 = vpack.c.b16 %v2660, %v2659
        %v2712 = vpack.c.b16 %v2662, %v2661
        %v2713 = vpack.c.b16 %v2664, %v2663
        %v2714 = vpack.c.b16 %v2666, %v2665
        %v2715 = vpack.c.b16 %v2668, %v2667
        %v2716 = vpack.c.b16 %v2670, %v2669
        %v2717 = vpack.c.b16 %v2672, %v2671
        %v2718 = vpack.c.b16 %v2674, %v2673
        %v2719 = vpack.c.b16 %v2676, %v2675
        %v2720 = vpack.c.b16 %v2678, %v2677
        %v2721 = vpack.c.b16 %v2680, %v2679
        %v2722 = vpack.c.b16 %v2682, %v2681
        %v2723 = vpack.c.b16 %v2684, %v2683
        %v2724 = vpack.c.b16 %v2686, %v2685
        %v2725 = vpack.c.b16 %v2688, %v2687
        %v2726 = vpack.c.b16 %v2690, %v2689
        %v2727 = vpack.c.b16 %v2692, %v2691
        %v2728 = vpack.c.b16 %v2694, %v2693
        %v2729 = vpack.c.b16 %v2696, %v2695
        %v2730 = vpack.c.b16 %v2698, %v2697
        %2763 = vmatpush.bf16.msra.mxu0 %v2706
        %2764 = vmatpush.bf16.msra.mxu0 %v2705
        %2765 = vmatpush.bf16.msra.mxu0 %v2704
        %2766 = vmatpush.bf16.msra.mxu0 %v2703
        %2767 = vmatpush.bf16.msra.mxu0 %v2702
        %2768 = vmatpush.bf16.msra.mxu0 %v2701
        %2769 = vmatpush.bf16.msra.mxu0 %v2700
        %2770 = vmatpush.bf16.msra.mxu0 %v2699
        %2771 = vmatmul.f32.gmra.mxu0 %v2563
        %v2772 = vpop.f32.mrf.mxu0
        %v2773 = vadd.f32 %v2560, %v2772
        %2774 = vdwg.mxu0
        %2775 = vmatpush.bf16.msra.mxu0 %v2714
        %2776 = vmatpush.bf16.msra.mxu0 %v2713
        %2777 = vmatpush.bf16.msra.mxu0 %v2712
        %2778 = vmatpush.bf16.msra.mxu0 %v2711
        %2779 = vmatpush.bf16.msra.mxu0 %v2710
        %2780 = vmatpush.bf16.msra.mxu0 %v2709
        %2781 = vmatpush.bf16.msra.mxu0 %v2708
        %2782 = vmatpush.bf16.msra.mxu0 %v2707
        %2783 = vmatmul.f32.gmra.mxu0 %v2564
        %v2784 = vpop.f32.mrf.mxu0
        %v2785 = vadd.f32 %v2773, %v2784
        %2786 = vdwg.mxu0
        %2787 = vmatpush.bf16.msra.mxu0 %v2722
        %2788 = vmatpush.bf16.msra.mxu0 %v2721
        %2789 = vmatpush.bf16.msra.mxu0 %v2720
        %2790 = vmatpush.bf16.msra.mxu0 %v2719
        %2791 = vmatpush.bf16.msra.mxu0 %v2718
        %2792 = vmatpush.bf16.msra.mxu0 %v2717
        %2793 = vmatpush.bf16.msra.mxu0 %v2716
        %2794 = vmatpush.bf16.msra.mxu0 %v2715
        %2795 = vmatmul.f32.gmra.mxu0 %v2565
        %v2796 = vpop.f32.mrf.mxu0
        %v2797 = vadd.f32 %v2785, %v2796
        %2798 = vdwg.mxu0
        %2799 = vmatpush.bf16.msra.mxu0 %v2730
        %2800 = vmatpush.bf16.msra.mxu0 %v2729
        %2801 = vmatpush.bf16.msra.mxu0 %v2728
        %2802 = vmatpush.bf16.msra.mxu0 %v2727
        %2803 = vmatpush.bf16.msra.mxu0 %v2726
        %2804 = vmatpush.bf16.msra.mxu0 %v2725
        %2805 = vmatpush.bf16.msra.mxu0 %v2724
        %2806 = vmatpush.bf16.msra.mxu0 %v2723
        %2807 = vmatmul.f32.gmra.mxu0 %v2566
        %v2808 = vpop.f32.mrf.mxu0
        %v2809 = vadd.f32 %v2797, %v2808
        %2810 = vdwg.mxu0
        %v2811 = vmax.f32 %v2809, 0.0
        %v2844 = vunpack.c.l.b16 %v2406
        %v2845 = vunpack.c.h.b16 %v2406
        %v2846 = vunpack.c.l.b16 %v2407
        %v2847 = vunpack.c.h.b16 %v2407
        %v2848 = vunpack.c.l.b16 %v2408
        %v2849 = vunpack.c.h.b16 %v2408
        %v2850 = vunpack.c.l.b16 %v2409
        %v2851 = vunpack.c.h.b16 %v2409
        %v2852 = vunpack.c.l.b16 %v2410
        %v2853 = vunpack.c.h.b16 %v2410
        %v2854 = vunpack.c.l.b16 %v2411
        %v2855 = vunpack.c.h.b16 %v2411
        %v2856 = vunpack.c.l.b16 %v2412
        %v2857 = vunpack.c.h.b16 %v2412
        %v2858 = vunpack.c.l.b16 %v2413
        %v2859 = vunpack.c.h.b16 %v2413
        %v2860 = vunpack.c.l.b16 %v2414
        %v2861 = vunpack.c.h.b16 %v2414
        %v2862 = vunpack.c.l.b16 %v2415
        %v2863 = vunpack.c.h.b16 %v2415
        %v2864 = vunpack.c.l.b16 %v2416
        %v2865 = vunpack.c.h.b16 %v2416
        %v2866 = vunpack.c.l.b16 %v2417
        %v2867 = vunpack.c.h.b16 %v2417
        %v2868 = vunpack.c.l.b16 %v2418
        %v2869 = vunpack.c.h.b16 %v2418
        %v2870 = vunpack.c.l.b16 %v2419
        %v2871 = vunpack.c.h.b16 %v2419
        %v2872 = vunpack.c.l.b16 %v2420
        %v2873 = vunpack.c.h.b16 %v2420
        %v2874 = vunpack.c.l.b16 %v2421
        %v2875 = vunpack.c.h.b16 %v2421
        %v2876 = vunpack.c.l.b16 %v2422
        %v2877 = vunpack.c.h.b16 %v2422
        %v2878 = vunpack.c.l.b16 %v2423
        %v2879 = vunpack.c.h.b16 %v2423
        %v2880 = vunpack.c.l.b16 %v2424
        %v2881 = vunpack.c.h.b16 %v2424
        %v2882 = vunpack.c.l.b16 %v2425
        %v2883 = vunpack.c.h.b16 %v2425
        %v2884 = vunpack.c.l.b16 %v2426
        %v2885 = vunpack.c.h.b16 %v2426
        %v2886 = vunpack.c.l.b16 %v2427
        %v2887 = vunpack.c.h.b16 %v2427
        %v2888 = vunpack.c.l.b16 %v2428
        %v2889 = vunpack.c.h.b16 %v2428
        %v2890 = vunpack.c.l.b16 %v2429
        %v2891 = vunpack.c.h.b16 %v2429
        %v2892 = vunpack.c.l.b16 %v2430
        %v2893 = vunpack.c.h.b16 %v2430
        %v2894 = vunpack.c.l.b16 %v2431
        %v2895 = vunpack.c.h.b16 %v2431
        %v2896 = vunpack.c.l.b16 %v2432
        %v2897 = vunpack.c.h.b16 %v2432
        %v2898 = vunpack.c.l.b16 %v2433
        %v2899 = vunpack.c.h.b16 %v2433
        %v2900 = vunpack.c.l.b16 %v2434
        %v2901 = vunpack.c.h.b16 %v2434
        %v2902 = vunpack.c.l.b16 %v2435
        %v2903 = vunpack.c.h.b16 %v2435
        %v2904 = vunpack.c.l.b16 %v2436
        %v2905 = vunpack.c.h.b16 %v2436
        %v2906 = vunpack.c.l.b16 %v2437
        %v2907 = vunpack.c.h.b16 %v2437
        %v2908 = vpack.c.b16 %v2848, %v2844
        %v2909 = vpack.c.b16 %v2849, %v2845
        %v2910 = vpack.c.b16 %v2850, %v2846
        %v2911 = vpack.c.b16 %v2851, %v2847
        %v2912 = vpack.c.b16 %v2856, %v2852
        %v2913 = vpack.c.b16 %v2857, %v2853
        %v2914 = vpack.c.b16 %v2858, %v2854
        %v2915 = vpack.c.b16 %v2859, %v2855
        %v2916 = vpack.c.b16 %v2864, %v2860
        %v2917 = vpack.c.b16 %v2865, %v2861
        %v2918 = vpack.c.b16 %v2866, %v2862
        %v2919 = vpack.c.b16 %v2867, %v2863
        %v2920 = vpack.c.b16 %v2872, %v2868
        %v2921 = vpack.c.b16 %v2873, %v2869
        %v2922 = vpack.c.b16 %v2874, %v2870
        %v2923 = vpack.c.b16 %v2875, %v2871
        %v2924 = vpack.c.b16 %v2880, %v2876
        %v2925 = vpack.c.b16 %v2881, %v2877
        %v2926 = vpack.c.b16 %v2882, %v2878
        %v2927 = vpack.c.b16 %v2883, %v2879
        %v2928 = vpack.c.b16 %v2888, %v2884
        %v2929 = vpack.c.b16 %v2889, %v2885
        %v2930 = vpack.c.b16 %v2890, %v2886
        %v2931 = vpack.c.b16 %v2891, %v2887
        %v2932 = vpack.c.b16 %v2896, %v2892
        %v2933 = vpack.c.b16 %v2897, %v2893
        %v2934 = vpack.c.b16 %v2898, %v2894
        %v2935 = vpack.c.b16 %v2899, %v2895
        %v2936 = vpack.c.b16 %v2904, %v2900
        %v2937 = vpack.c.b16 %v2905, %v2901
        %v2938 = vpack.c.b16 %v2906, %v2902
        %v2939 = vpack.c.b16 %v2907, %v2903
        %2972 = vmatpush.bf16.msra.mxu0 %v2936
        %2973 = vmatpush.bf16.msra.mxu0 %v2932
        %2974 = vmatpush.bf16.msra.mxu0 %v2928
        %2975 = vmatpush.bf16.msra.mxu0 %v2924
        %2976 = vmatpush.bf16.msra.mxu0 %v2920
        %2977 = vmatpush.bf16.msra.mxu0 %v2916
        %2978 = vmatpush.bf16.msra.mxu0 %v2912
        %2979 = vmatpush.bf16.msra.mxu0 %v2908
        %2980 = vmatmul.f32.gmra.mxu0 %v2811
        %v2981 = vpop.f32.mrf.mxu0
        %v2982 = vadd.f32 0.0, %v2981
        %2983 = vdwg.mxu0
        %2984 = vmatpush.bf16.msra.mxu0 %v2937
        %2985 = vmatpush.bf16.msra.mxu0 %v2933
        %2986 = vmatpush.bf16.msra.mxu0 %v2929
        %2987 = vmatpush.bf16.msra.mxu0 %v2925
        %2988 = vmatpush.bf16.msra.mxu0 %v2921
        %2989 = vmatpush.bf16.msra.mxu0 %v2917
        %2990 = vmatpush.bf16.msra.mxu0 %v2913
        %2991 = vmatpush.bf16.msra.mxu0 %v2909
        %2992 = vmatmul.f32.gmra.mxu0 %v2811
        %v2993 = vpop.f32.mrf.mxu0
        %v2994 = vadd.f32 0.0, %v2993
        %2995 = vdwg.mxu0
        %2996 = vmatpush.bf16.msra.mxu0 %v2938
        %2997 = vmatpush.bf16.msra.mxu0 %v2934
        %2998 = vmatpush.bf16.msra.mxu0 %v2930
        %2999 = vmatpush.bf16.msra.mxu0 %v2926
        %3000 = vmatpush.bf16.msra.mxu0 %v2922
        %3001 = vmatpush.bf16.msra.mxu0 %v2918
        %3002 = vmatpush.bf16.msra.mxu0 %v2914
        %3003 = vmatpush.bf16.msra.mxu0 %v2910
        %3004 = vmatmul.f32.gmra.mxu0 %v2811
        %v3005 = vpop.f32.mrf.mxu0
        %v3006 = vadd.f32 0.0, %v3005
        %3007 = vdwg.mxu0
        %3008 = vmatpush.bf16.msra.mxu0 %v2939
        %3009 = vmatpush.bf16.msra.mxu0 %v2935
        %3010 = vmatpush.bf16.msra.mxu0 %v2931
        %3011 = vmatpush.bf16.msra.mxu0 %v2927
        %3012 = vmatpush.bf16.msra.mxu0 %v2923
        %3013 = vmatpush.bf16.msra.mxu0 %v2919
        %3014 = vmatpush.bf16.msra.mxu0 %v2915
        %3015 = vmatpush.bf16.msra.mxu0 %v2911
        %3016 = vmatmul.f32.gmra.mxu0 %v2811
        %v3017 = vpop.f32.mrf.mxu0
        %v3018 = vadd.f32 0.0, %v3017
        %3019 = vdwg.mxu0
        %v3020 = vmul.f32 %v2982, %v2304
        %v3021 = vmul.f32 %v2994, %v2305
        %v3022 = vmul.f32 %v2982, %v2308
        %v3023 = vmul.f32 %v2994, %v2309
        %v3024 = vadd.f32 %v3022, %v3006
        %v3025 = vadd.f32 %v3023, %v3018
        %v3026 = vperm.slane %v3020, 0
        %v3027 = vperm.slane %v3021, 0
        %v3028 = vmul.f32 %v3026, %v288
        %v3029 = vmul.f32 %v3027, %v289
        %v3030 = vperm.slane %v3024, 0
        %v3031 = vperm.slane %v3025, 0
        %v3032 = vadd.f32 %v3028, %v3030
        %v3033 = vadd.f32 %v3029, %v3031
        %3034 = vst [vmem:[%s287] sm:$0xff] %v3032
        %3035 = vst [vmem:[%s287 + $0x8] sm:$0xff] %v3033
        %s3036 = sand.u32 %s127, 1
        %s3037 = scalar_lea.sflag [#allocation4], %s3036
        %s3038 = sand.u32 %s127, 1
        %s3039 = smul.addr %s3038, 16
        %s3040 = scalar_lea.vmem [#allocation10], %s3039
        // Predicated region
        $region53: #{tpu_custom_call.1} parent=35 // pred_check
          %p3041 = pneg %p137
        $region54: #{tpu_custom_call.1} parent=35 // pred_check_branch
          %3043 = sbr.rel (%p3041) target = $region56
        $region55: #{tpu_custom_call.1} parent=35 // pred_region
          %3045 = vsyncadd %s3037, 0
          %s3046 = smul.addr %s25, 2
          %s3047 = smul.addr %s3046, 8
          %s3048 = scalar_lea.hbm %s4, %s3047
          %s3050 = sshll.u32 %s3040, 4
          %s3051 = int_to_ptr.vmem [resolvable:$true] %s3050
          %s3052 = sshll.u32 %s3048, 4
          %s3053 = int_to_ptr.hbm [resolvable:$true] %s3052
          %3055 = dma.vmem_to_hbm [thread:$0]  %s3051, 256, %s3053, %s3037
        $region56: #{tpu_custom_call.1} parent=35 // pred_fallthru
          _
      $region36: #{tpu_custom_call.1} parent=5 // pred_fallthru
        _
      %p3056 = scmp.le.s32.totalorder 2, %s20
      // Predicated region
      $region57: #{tpu_custom_call.1} parent=5 // pred_check
        %p3057 = pneg %p3056
      $region58: #{tpu_custom_call.1} parent=5 // pred_check_branch
        %3059 = sbr.rel (%p3057) target = $region60
      $region59: #{tpu_custom_call.1} parent=5 // pred_region
        %s3060 = ssub.s32 %s20, 2
        // Predicated region
        $region61: #{tpu_custom_call.1} parent=59 // pred_check
          %p3061 = pneg %p143
        $region62: #{tpu_custom_call.1} parent=59 // pred_check_branch
          %3063 = sbr.rel (%p3061) target = $region64
        $region63: #{tpu_custom_call.1} parent=59 // pred_region
          %s3064 = sand.u32 %s128, 1
          %s3065 = scalar_lea.sflag [#allocation4], %s3064
          %s3066 = sand.u32 %s128, 1
          %s3067 = smul.addr %s3066, 16
          %s3068 = scalar_lea.vmem [#allocation10], %s3067
          %3070 = dma.done %s3065, 256
        $region64: #{tpu_custom_call.1} parent=59 // pred_fallthru
          _
      $region60: #{tpu_custom_call.1} parent=5 // pred_fallthru
        _
    $region6: #{tpu_custom_call.1} parent=1 // loop_footer
      %s24 = sadd.s32 1, %s20
    $region7: #{tpu_custom_call.1} parent=1 // loop_footer_branch
      %19 = sbr.rel target = $region3
    $region8: #{tpu_custom_call.1} parent=1 // loop_exit
      _
    %3071 = vsyncpa [#allocation3], 1
    %s3072 = scalar_lea.sflag [#allocation3], 1
    %3073 = vsyncpa %s3072, 1
    %3074 = vsyncpa [#allocation6], 1
    %s3075 = scalar_lea.sflag [#allocation6], 1
    %3076 = vsyncpa %s3075, 1
    %3077 = vsyncpa [#allocation9], 1
    %3078 = vsyncpa [#allocation4], 1
    %s3079 = scalar_lea.sflag [#allocation4], 1
    %3080 = vsyncpa %s3079, 1

</llo_original>
